<compile_context>
chip_gen: v6e
topology: v6e:2x2x1
jax: 0.10.0
libtpu: 0.0.40
codegen_flags: <defaults>
</compile_context>

<pallas_src>
import functools
import math

import jax
import jax.numpy as jnp
from jax.experimental import pallas as pl
from jax.experimental.pallas import tpu as pltpu


# -----------------------------------------------------------------------------
# Generation-aware tuning helpers.
# -----------------------------------------------------------------------------
def _vmem_limit_bytes():
    """~100 MiB on 128-MiB-VMEM chips (v5e/v6e), ~54 MiB on v7x (64 MiB),
    leaving headroom for compiler scratch / spills."""
    try:
        cap = int(pltpu.get_tpu_info().vmem_capacity_bytes)
    except Exception:  # non-TPU / very old runtime: conservative default
        cap = 128 * 1024 * 1024
    return min(int(cap * 0.85), 100 * 1024 * 1024)


def _default_seq_tile():
    # Bigger query tiles on 128-MiB chips: better MXU fill, half the per-step
    # overhead.  Keep 128 on v7x (64 MiB VMEM).
    return 256 if _vmem_limit_bytes() >= 96 * 1024 * 1024 else 128


_SINGLE_BUFFER_SUPPORTED = None


def _single_buffer_supported():
    """Feature-probe for pipeline_mode=pl.Buffered(1) on constant-index operands
    (single-buffered weights).  Falls back to default double-buffering if the
    running JAX/Mosaic rejects it, so the kernel always runs."""
    global _SINGLE_BUFFER_SUPPORTED
    if _SINGLE_BUFFER_SUPPORTED is None:
        try:
            def _probe(x_ref, o_ref):
                o_ref[...] = x_ref[...] + 1.0

            y = pl.pallas_call(
                _probe,
                out_shape=jax.ShapeDtypeStruct((8, 128), jnp.float32),
                grid=(2,),
                in_specs=[pl.BlockSpec((8, 128), lambda i: (0, 0),
                                       pipeline_mode=pl.Buffered(1))],
                out_specs=pl.BlockSpec((8, 128), lambda i: (0, 0)),
            )(jnp.zeros((8, 128), jnp.float32))
            y = jax.block_until_ready(y)
            _SINGLE_BUFFER_SUPPORTED = bool(jnp.allclose(y, 1.0))
        except Exception:  # construction or lowering failure -> fall back
            _SINGLE_BUFFER_SUPPORTED = False
    return _SINGLE_BUFFER_SUPPORTED


# -----------------------------------------------------------------------------
# Pallas kernel: one post-norm TransformerEncoderLayer for one (batch, q-tile).
# -----------------------------------------------------------------------------
def _encoder_layer_kernel(
    xq_ref,     # (1, tq, D)    f32  query slab (residual path)
    xkv_ref,    # (1, L, D)     bf16 full-sequence context (K/V source)
    m_ref,      # (H, tq, L)    bf16 additive attention mask slab
    wq_ref,     # (D, D)        bf16 (1/sqrt(hd) scale folded in)
    wkv_ref,    # (D, 2D)       bf16
    bkv_ref,    # (1, 2D)       f32
    wout_ref,   # (D, D)        bf16
    w1_ref,     # (D, F)        bf16
    b1_ref,     # (1, F)        f32
    w2_ref,     # (F, D)        bf16
    vec_ref,    # (8, D)        f32  [bq, bout, b2, ln1w, ln1b, ln2w, ln2b, 0]
    o_ref,      # (1, tq, D)    f32  output
    obf_ref,    # (1, tq, D)    bf16 output (next layer's context stream)
    kv_ref,     # (2, H, L, hd) bf16 VMEM scratch: cached head-major K / V
    *,
    heads: int,
    head_dim: int,
):
    D = heads * head_dim
    hd = head_dim
    eps = 1e-5
    bf16, f32 = jnp.bfloat16, jnp.float32

    # ---- K/V projection: computed ONCE per batch (qi == 0), cached head-major
    #      in VMEM scratch and reused for every query tile of this batch. ----
    @pl.when(pl.program_id(1) == 0)
    def _():
        kv = jnp.dot(xkv_ref[0], wkv_ref[...], preferred_element_type=f32) + bkv_ref[...]
        for h in range(heads):                      # static loop, once per batch
            kv_ref[0, h] = kv[:, h * hd:(h + 1) * hd].astype(bf16)           # K_h
            kv_ref[1, h] = kv[:, D + h * hd:D + (h + 1) * hd].astype(bf16)   # V_h

    vec = vec_ref[...]
    bq, bout, b2 = vec[0:1], vec[1:2], vec[2:3]
    ln1w, ln1b, ln2w, ln2b = vec[3:4], vec[4:5], vec[5:6], vec[6:7]

    x_q = xq_ref[0]                                            # [tq, D] f32

    # ---- Q projection (attention scale already folded into wq/bq) ----
    q = jnp.dot(x_q.astype(bf16), wq_ref[...], preferred_element_type=f32) + bq

    # Per-step head split only touches the small [tq, D] tensor; the expensive
    # full-sequence K/V split was hoisted into the once-per-batch scratch fill.
    qh = jnp.stack([q[:, h * hd:(h + 1) * hd] for h in range(heads)],
                   axis=0).astype(bf16)                        # [H, tq, hd]
    kh = kv_ref[0]                                             # [H, L,  hd] bf16
    vh = kv_ref[1]                                             # [H, L,  hd] bf16

    # ---- Batched multi-head attention ----
    s = jnp.einsum("hqd,hkd->hqk", qh, kh, preferred_element_type=f32)  # [H, tq, L]
    s = s + m_ref[...].astype(f32)
    s = s - jnp.max(s, axis=-1, keepdims=True)
    p = jnp.exp(s)
    # Approx reciprocal runs on the EUP slot; sum >= 1 after max-subtraction so
    # no divide-by-zero even for fully-masked (finite-mask) rows.
    p = p * pl.reciprocal(jnp.sum(p, axis=-1, keepdims=True), approx=True)

    attn_h = jnp.einsum("hqk,hkd->hqd", p.astype(bf16), vh,
                        preferred_element_type=f32)                      # [H, tq, hd]
    attn = jnp.concatenate([attn_h[h] for h in range(heads)], axis=-1)   # [tq, D]

    # ---- Output projection + residual + LayerNorm 1 ----
    attn = jnp.dot(attn.astype(bf16), wout_ref[...], preferred_element_type=f32) + bout
    y = x_q + attn
    mu = jnp.mean(y, axis=-1, keepdims=True)
    var = jnp.mean((y - mu) ** 2, axis=-1, keepdims=True)
    y = (y - mu) * jax.lax.rsqrt(var + eps) * ln1w + ln1b

    # ---- Feed-forward (relu) + residual + LayerNorm 2 ----
    h1 = jnp.dot(y.astype(bf16), w1_ref[...], preferred_element_type=f32) + b1_ref[...]
    h1 = jnp.maximum(h1, 0.0)
    h2 = jnp.dot(h1.astype(bf16), w2_ref[...], preferred_element_type=f32) + b2
    z = y + h2
    mu2 = jnp.mean(z, axis=-1, keepdims=True)
    var2 = jnp.mean((z - mu2) ** 2, axis=-1, keepdims=True)
    z = (z - mu2) * jax.lax.rsqrt(var2 + eps) * ln2w + ln2b

    o_ref[0] = z
    obf_ref[0] = z.astype(bf16)


# -----------------------------------------------------------------------------
# Wrapper: one encoder layer via pallas_call.
# -----------------------------------------------------------------------------
def encoder_layer(x, x_bf, m_bf, p, *, heads, seq_tile):
    """x: [B, L, D] f32 (query/residual), x_bf: same values in bf16 (K/V context
    stream), m_bf: [B*H, L, L] bf16 additive mask.  Returns (f32 out, bf16 out);
    the bf16 copy feeds the next layer's context so that stream stays half-width."""
    B, L, D = x.shape
    hd = D // heads
    F = p["w1"].shape[1]

    tq = seq_tile if (L > seq_tile and L % seq_tile == 0) else L
    nq = L // tq

    kernel = functools.partial(_encoder_layer_kernel, heads=heads, head_dim=hd)
    single_buffer = _single_buffer_supported()

    def const_spec(shape):
        # Constant-index operand (weights / biases): single-buffer when supported
        # (halves resident parameter VMEM; required headroom on v7x).
        zeros = (0,) * len(shape)
        if single_buffer:
            return pl.BlockSpec(shape, lambda b, qi: zeros,
                                pipeline_mode=pl.Buffered(1))
        return pl.BlockSpec(shape, lambda b, qi: zeros)

    grid_spec = pltpu.PrefetchScalarGridSpec(
        num_scalar_prefetch=0,
        grid=(B, nq),
        in_specs=[
            pl.BlockSpec((1, tq, D), lambda b, qi: (b, qi, 0)),      # query slab (f32)
            pl.BlockSpec((1, L, D), lambda b, qi: (b, 0, 0)),        # context (bf16)
            pl.BlockSpec((heads, tq, L), lambda b, qi: (b, qi, 0)),  # mask slab (bf16)
            const_spec((D, D)),        # wq
            const_spec((D, 2 * D)),    # wkv
            const_spec((1, 2 * D)),    # bkv
            const_spec((D, D)),        # wout
            const_spec((D, F)),        # w1
            const_spec((1, F)),        # b1
            const_spec((F, D)),        # w2
            const_spec((8, D)),        # packed bq/bout/b2/ln* vectors
        ],
        out_specs=(
            pl.BlockSpec((1, tq, D), lambda b, qi: (b, qi, 0)),      # f32 output
            pl.BlockSpec((1, tq, D), lambda b, qi: (b, qi, 0)),      # bf16 output
        ),
        scratch_shapes=[pltpu.VMEM((2, heads, L, hd), jnp.bfloat16)],
    )

    # Advisory cost estimate (KV projection counted once per batch).
    flops = int(2 * B * L * D * (4 * D + 2 * F) + 4 * B * heads * L * L * hd)
    transcendentals = int(B * heads * L * L)
    bytes_accessed = int(
        B * L * D * (4 + 2)                # f32 query slabs + bf16 context
        + B * heads * L * L * 2            # bf16 mask
        + B * L * D * (4 + 2)              # f32 + bf16 outputs
        + 2 * (4 * D * D + 2 * D * F)      # bf16 weights
    )

    return pl.pallas_call(
        kernel,
        out_shape=(jax.ShapeDtypeStruct((B, L, D), jnp.float32),
                   jax.ShapeDtypeStruct((B, L, D), jnp.bfloat16)),
        grid_spec=grid_spec,
        compiler_params=pltpu.CompilerParams(
            # qi carries the per-batch K/V scratch state -> "arbitrary";
            # batch axis stays "parallel" for megacore sharding.
            dimension_semantics=("parallel", "arbitrary"),
            vmem_limit_bytes=_vmem_limit_bytes(),
        ),
        cost_estimate=pl.CostEstimate(flops=flops,
                                      transcendentals=transcendentals,
                                      bytes_accessed=bytes_accessed),
    )(x, x_bf, m_bf,
      p["wq"], p["wkv"], p["bkv"], p["wout"],
      p["w1"], p["b1"], p["w2"], p["vecs"])


# -----------------------------------------------------------------------------
# Parameter init (deterministic) and full-transformer wrapper.
# -----------------------------------------------------------------------------
def init_params(key, layers, dimension, heads, dimension_feedforward):
    D, F = dimension, dimension_feedforward
    hd = D // heads
    scale = 1.0 / math.sqrt(hd)
    bf16, f32 = jnp.bfloat16, jnp.float32
    params = []
    for i in range(layers):
        ks = jax.random.split(jax.random.fold_in(key, i), 10)
        # The 1/sqrt(head_dim) attention scale is folded into wq/bq here
        # (PyTorch applies it post-projection; mathematically identical) so the
        # kernel drops a [tq, D] VPU multiply per grid step.
        bq = jax.random.normal(ks[1], (1, D), f32) * 0.02 * scale
        bout = jax.random.normal(ks[5], (1, D), f32) * 0.02
        b2 = jax.random.normal(ks[9], (1, D), f32) * 0.02
        ln1w, ln1b = jnp.ones((1, D), f32), jnp.zeros((1, D), f32)
        ln2w, ln2b = jnp.ones((1, D), f32), jnp.zeros((1, D), f32)
        p = {
            # Matmul weights stored in bf16 (MXU-native; halves weight DMA/VMEM).
            "wq":   (jax.random.normal(ks[0], (D, D), f32) * 0.02 * scale).astype(bf16),
            "wkv":  (jax.random.normal(ks[2], (D, 2 * D), f32) * 0.02).astype(bf16),
            "bkv":  jax.random.normal(ks[3], (1, 2 * D), f32) * 0.02,
            "wout": (jax.random.normal(ks[4], (D, D), f32) * 0.02).astype(bf16),
            "w1":   (jax.random.normal(ks[6], (D, F), f32) * 0.02).astype(bf16),
            "b1":   jax.random.normal(ks[7], (1, F), f32) * 0.02,
            "w2":   (jax.random.normal(ks[8], (F, D), f32) * 0.02).astype(bf16),
            # Eight (1, D) vectors packed into one (8, D) operand -> one DMA
            # descriptor / one padded VMEM tile instead of seven.
            "vecs": jnp.concatenate(
                [bq, bout, b2, ln1w, ln1b, ln2w, ln2b, jnp.zeros((1, D), f32)],
                axis=0),
        }
        params.append(p)
    return params


def transformer_forward(x, m, params, *, heads, seq_tile=None):
    """x: [B, L, D] f32, m: [B*H, L, L] f32 additive mask -> [B, L, D] f32."""
    B, L, D = x.shape
    if seq_tile is None:
        seq_tile = _default_seq_tile()

    # Pad L to a multiple of the sequence tile when tiling is used (padded key
    # columns are masked with -1e9) instead of falling back to a whole-sequence
    # score slab.
    Lp = L
    if L > seq_tile and L % seq_tile != 0:
        Lp = int(seq_tile * pl.cdiv(L, seq_tile))
    if Lp != L:
        x = jnp.pad(x, ((0, 0), (0, Lp - L), (0, 0)))
        m = jnp.pad(m, ((0, 0), (0, Lp - L), (0, Lp - L)))
        m = m.at[:, :, L:].set(-1e9)   # never attend to padded keys

    m_bf = m.astype(jnp.bfloat16)      # halve the dominant mask HBM stream
    x_bf = x.astype(jnp.bfloat16)      # bf16 K/V context for the first layer
    for p in params:
        x, x_bf = encoder_layer(x, x_bf, m_bf, p, heads=heads, seq_tile=seq_tile)
    return x[:, :L, :] if Lp != L else x


# -----------------------------------------------------------------------------
# Pure-JAX reference (mirrors kernel numerics: bf16 matmul operands, f32 accum).
# -----------------------------------------------------------------------------
def _ref_layer(x, m_bf, p, heads):
    B, L, D = x.shape
    hd = D // heads
    f32, bf16 = jnp.float32, jnp.bfloat16
    vec = p["vecs"]
    bq, bout, b2 = vec[0], vec[1], vec[2]
    ln1w, ln1b, ln2w, ln2b = vec[3], vec[4], vec[5], vec[6]

    xb = x.astype(bf16)
    q = jnp.einsum("bld,de->ble", xb, p["wq"], preferred_element_type=f32) + bq
    kv = jnp.einsum("bld,de->ble", xb, p["wkv"], preferred_element_type=f32) + p["bkv"][0]
    k, v = kv[..., :D], kv[..., D:]

    def split(t):  # [B, L, D] -> [B, H, L, hd] bf16
        return t.reshape(B, L, heads, hd).transpose(0, 2, 1, 3).astype(bf16)

    qh, kh, vh = split(q), split(k), split(v)
    s = jnp.einsum("bhqe,bhke->bhqk", qh, kh, preferred_element_type=f32)
    s = s + m_bf.astype(f32).reshape(B, heads, L, L)
    a = jax.nn.softmax(s, axis=-1)
    o = jnp.einsum("bhqk,bhke->bhqe", a.astype(bf16), vh, preferred_element_type=f32)
    o = o.transpose(0, 2, 1, 3).reshape(B, L, D)
    o = jnp.einsum("bld,de->ble", o.astype(bf16), p["wout"],
                   preferred_element_type=f32) + bout

    def ln(y, w, b):
        mu = y.mean(-1, keepdims=True)
        var = ((y - mu) ** 2).mean(-1, keepdims=True)
        return (y - mu) * jax.lax.rsqrt(var + 1e-5) * w + b

    y = ln(x + o, ln1w, ln1b)
    h1 = jnp.maximum(jnp.einsum("bld,df->blf", y.astype(bf16), p["w1"],
                                preferred_element_type=f32) + p["b1"][0], 0.0)
    h2 = jnp.einsum("blf,fd->bld", h1.astype(bf16), p["w2"],
                    preferred_element_type=f32) + b2
    return ln(y + h2, ln2w, ln2b)


if __name__ == "__main__":
    layers, D, heads, F = 2, 32, 4, 64
    B, L = 2, 8

    key = jax.random.PRNGKey(0)
    kx, km, kp = jax.random.split(key, 3)

    x = jax.random.normal(kx, (B, L, D), jnp.float32)
    m = jax.random.normal(km, (B * heads, L, L), jnp.float32) * 0.1  # additive mask
    params = init_params(kp, layers, D, heads, F)

    out = jax.block_until_ready(transformer_forward(x, m, params, heads=heads))
    assert out.shape == (B, L, D)

    m_bf = m.astype(jnp.bfloat16)
    ref = x
    for p in params:
        ref = _ref_layer(ref, m_bf, p, heads)
    err = float(jnp.max(jnp.abs(out - ref)))
    assert jnp.allclose(out, ref, atol=1e-2, rtol=1e-2), err

    # Second check: L not a multiple of the sequence tile -> padded, multi-tile
    # path (exercises per-batch K/V scratch reuse across query tiles + padding).
    L2, tile2 = 12, 8
    x2 = jax.random.normal(jax.random.fold_in(kx, 1), (B, L2, D), jnp.float32)
    m2 = jax.random.normal(jax.random.fold_in(km, 1), (B * heads, L2, L2),
                           jnp.float32) * 0.1
    out2 = jax.block_until_ready(
        transformer_forward(x2, m2, params, heads=heads, seq_tile=tile2))
    assert out2.shape == (B, L2, D)
    ref2 = x2
    m2_bf = m2.astype(jnp.bfloat16)
    for p in params:
        ref2 = _ref_layer(ref2, m2_bf, p, heads)
    err2 = float(jnp.max(jnp.abs(out2 - ref2)))
    assert jnp.allclose(out2, ref2, atol=1e-2, rtol=1e-2), err2

    print("KERNEL_OK")
</pallas_src>

<mosaic_0001>
module attributes {stable_mosaic.version = 11 : i64} {
  func.func @_probe(%arg0: i32, %arg1: memref<8x128xf32, #tpu.memory_space<vmem>>, %arg2: memref<8x128xf32, #tpu.memory_space<vmem>>) attributes {dimension_semantics = [#tpu.dimension_semantics<arbitrary>], iteration_bounds = array<i64: 2>, scalar_prefetch = 0 : i64, scratch_operands = 0 : i64, tpu.core_type = #tpu.core_type<tc>, window_params = [{pipeline_mode = #tpu.pipeline_mode<synchronous>, transform_indices = @transform_0, window_bounds = array<i64: 8, 128>}, {pipeline_mode = #tpu.pipeline_mode<synchronous>, transform_indices = @transform_1, window_bounds = array<i64: 8, 128>}]} {
    %c0 = arith.constant 0 : index
    %c0_0 = arith.constant 0 : index
    %0 = vector.load %arg1[%c0, %c0_0] : memref<8x128xf32, #tpu.memory_space<vmem>>, vector<8x128xf32>
    %cst = arith.constant 1.000000e+00 : f32
    %1 = vector.broadcast %cst : f32 to vector<8x128xf32>
    %2 = arith.addf %0, %1 : vector<8x128xf32>
    %c0_1 = arith.constant 0 : index
    %c0_2 = arith.constant 0 : index
    %3 = vector.load %arg2[%c0_1, %c0_2] : memref<8x128xf32, #tpu.memory_space<vmem>>, vector<8x128xf32>
    tpu.vector_store %arg2[%c0_1, %c0_2], %2 {strides = array<i32>} : memref<8x128xf32, #tpu.memory_space<vmem>>, vector<8x128xf32>,
    return
  }
  func.func @transform_0(%arg0: i32) -> (i32, i32) {
    %c0_i32 = arith.constant 0 : i32
    %c0_i32_0 = arith.constant 0 : i32
    %c0_i32_1 = arith.constant 0 : i32
    return %c0_i32, %c0_i32_0 : i32, i32
  }
  func.func @transform_1(%arg0: i32) -> (i32, i32) {
    %c0_i32 = arith.constant 0 : i32
    %c0_i32_0 = arith.constant 0 : i32
    %c0_i32_1 = arith.constant 0 : i32
    return %c0_i32, %c0_i32_0 : i32, i32
  }
}

module attributes {stable_mosaic.version = 11 : i64} {
  func.func @_encoder_layer_kernel(%arg0: i32, %arg1: i32, %arg2: memref<1x8x32xf32, #tpu.memory_space<vmem>>, %arg3: memref<1x8x32xbf16, #tpu.memory_space<vmem>>, %arg4: memref<4x8x8xbf16, #tpu.memory_space<vmem>>, %arg5: memref<32x32xbf16, #tpu.memory_space<vmem>>, %arg6: memref<32x64xbf16, #tpu.memory_space<vmem>>, %arg7: memref<1x64xf32, #tpu.memory_space<vmem>>, %arg8: memref<32x32xbf16, #tpu.memory_space<vmem>>, %arg9: memref<32x64xbf16, #tpu.memory_space<vmem>>, %arg10: memref<1x64xf32, #tpu.memory_space<vmem>>, %arg11: memref<64x32xbf16, #tpu.memory_space<vmem>>, %arg12: memref<8x32xf32, #tpu.memory_space<vmem>>, %arg13: memref<1x8x32xf32, #tpu.memory_space<vmem>>, %arg14: memref<1x8x32xbf16, #tpu.memory_space<vmem>>, %arg15: memref<2x4x8x8xbf16, #tpu.memory_space<vmem>>) attributes {dimension_semantics = [#tpu.dimension_semantics<parallel>, #tpu.dimension_semantics<arbitrary>], iteration_bounds = array<i64: 2, 1>, scalar_prefetch = 0 : i64, scratch_operands = 1 : i64, tpu.core_type = #tpu.core_type<tc>, window_params = [{transform_indices = @transform_0, window_bounds = array<i64: 1, 8, 32>}, {transform_indices = @transform_1, window_bounds = array<i64: 1, 8, 32>}, {transform_indices = @transform_2, window_bounds = array<i64: 4, 8, 8>}, {pipeline_mode = #tpu.pipeline_mode<synchronous>, transform_indices = @transform_3, window_bounds = array<i64: 32, 32>}, {pipeline_mode = #tpu.pipeline_mode<synchronous>, transform_indices = @transform_4, window_bounds = array<i64: 32, 64>}, {pipeline_mode = #tpu.pipeline_mode<synchronous>, transform_indices = @transform_5, window_bounds = array<i64: 1, 64>}, {pipeline_mode = #tpu.pipeline_mode<synchronous>, transform_indices = @transform_6, window_bounds = array<i64: 32, 32>}, {pipeline_mode = #tpu.pipeline_mode<synchronous>, transform_indices = @transform_7, window_bounds = array<i64: 32, 64>}, {pipeline_mode = #tpu.pipeline_mode<synchronous>, transform_indices = @transform_8, window_bounds = array<i64: 1, 64>}, {pipeline_mode = #tpu.pipeline_mode<synchronous>, transform_indices = @transform_9, window_bounds = array<i64: 64, 32>}, {pipeline_mode = #tpu.pipeline_mode<synchronous>, transform_indices = @transform_10, window_bounds = array<i64: 8, 32>}, {transform_indices = @transform_11, window_bounds = array<i64: 1, 8, 32>}, {transform_indices = @transform_12, window_bounds = array<i64: 1, 8, 32>}]} {
    %c0_i32 = arith.constant 0 : i32
    %0 = arith.cmpi eq, %arg1, %c0_i32 : i32
    %1 = arith.extui %0 : i1 to i32
    %c0_i32_0 = arith.constant 0 : i32
    %2 = arith.cmpi ne, %1, %c0_i32_0 : i32
    scf.if %2 {
      %c0_49 = arith.constant 0 : index
      %c0_50 = arith.constant 0 : index
      %c0_51 = arith.constant 0 : index
      %128 = vector.load %arg3[%c0_49, %c0_50, %c0_51] : memref<1x8x32xbf16, #tpu.memory_space<vmem>>, vector<1x8x32xbf16>
      %129 = vector.shape_cast %128 : vector<1x8x32xbf16> to vector<8x32xbf16>
      %c0_52 = arith.constant 0 : index
      %c0_53 = arith.constant 0 : index
      %130 = vector.load %arg6[%c0_52, %c0_53] : memref<32x64xbf16, #tpu.memory_space<vmem>>, vector<32x64xbf16>
      %cst_54 = arith.constant dense<0.000000e+00> : vector<8x64xf32>
      %131 = tpu.matmul %129, %130, %cst_54 {dimension_numbers = #tpu.dot_dimension_numbers<[1], [0], [0], [1], [0, 0, 1, 1], [], []>} : vector<8x32xbf16>, vector<32x64xbf16>, vector<8x64xf32> -> vector<8x64xf32>
      %c0_55 = arith.constant 0 : index
      %c0_56 = arith.constant 0 : index
      %132 = vector.load %arg7[%c0_55, %c0_56] : memref<1x64xf32, #tpu.memory_space<vmem>>, vector<1x64xf32>
      %133 = vector.broadcast %132 : vector<1x64xf32> to vector<8x64xf32>
      %134 = arith.addf %131, %133 : vector<8x64xf32>
      %135 = vector.extract_strided_slice %134 {offsets = [0, 0], sizes = [8, 8], strides = [1, 1]} : vector<8x64xf32> to vector<8x8xf32>
      %136 = arith.truncf %135 : vector<8x8xf32> to vector<8x8xbf16>
      %c0_57 = arith.constant 0 : index
      %c0_58 = arith.constant 0 : index
      %c0_59 = arith.constant 0 : index
      %c0_60 = arith.constant 0 : index
      %137 = vector.load %arg15[%c0_57, %c0_58, %c0_59, %c0_60] : memref<2x4x8x8xbf16, #tpu.memory_space<vmem>>, vector<1x1x8x8xbf16>
      %138 = vector.shape_cast %137 : vector<1x1x8x8xbf16> to vector<8x8xbf16>
      %139 = vector.shape_cast %136 : vector<8x8xbf16> to vector<1x1x8x8xbf16>
      tpu.vector_store %arg15[%c0_57, %c0_58, %c0_59, %c0_60], %139 {strides = array<i32>} : memref<2x4x8x8xbf16, #tpu.memory_space<vmem>>, vector<1x1x8x8xbf16>,
      %140 = vector.extract_strided_slice %134 {offsets = [0, 32], sizes = [8, 8], strides = [1, 1]} : vector<8x64xf32> to vector<8x8xf32>
      %141 = arith.truncf %140 : vector<8x8xf32> to vector<8x8xbf16>
      %c1_61 = arith.constant 1 : index
      %c0_62 = arith.constant 0 : index
      %c0_63 = arith.constant 0 : index
      %c0_64 = arith.constant 0 : index
      %142 = vector.load %arg15[%c1_61, %c0_62, %c0_63, %c0_64] : memref<2x4x8x8xbf16, #tpu.memory_space<vmem>>, vector<1x1x8x8xbf16>
      %143 = vector.shape_cast %142 : vector<1x1x8x8xbf16> to vector<8x8xbf16>
      %144 = vector.shape_cast %141 : vector<8x8xbf16> to vector<1x1x8x8xbf16>
      tpu.vector_store %arg15[%c1_61, %c0_62, %c0_63, %c0_64], %144 {strides = array<i32>} : memref<2x4x8x8xbf16, #tpu.memory_space<vmem>>, vector<1x1x8x8xbf16>,
      %145 = vector.extract_strided_slice %134 {offsets = [0, 8], sizes = [8, 8], strides = [1, 1]} : vector<8x64xf32> to vector<8x8xf32>
      %146 = arith.truncf %145 : vector<8x8xf32> to vector<8x8xbf16>
      %c0_65 = arith.constant 0 : index
      %c1_66 = arith.constant 1 : index
      %c0_67 = arith.constant 0 : index
      %c0_68 = arith.constant 0 : index
      %147 = vector.load %arg15[%c0_65, %c1_66, %c0_67, %c0_68] : memref<2x4x8x8xbf16, #tpu.memory_space<vmem>>, vector<1x1x8x8xbf16>
      %148 = vector.shape_cast %147 : vector<1x1x8x8xbf16> to vector<8x8xbf16>
      %149 = vector.shape_cast %146 : vector<8x8xbf16> to vector<1x1x8x8xbf16>
      tpu.vector_store %arg15[%c0_65, %c1_66, %c0_67, %c0_68], %149 {strides = array<i32>} : memref<2x4x8x8xbf16, #tpu.memory_space<vmem>>, vector<1x1x8x8xbf16>,
      %150 = vector.extract_strided_slice %134 {offsets = [0, 40], sizes = [8, 8], strides = [1, 1]} : vector<8x64xf32> to vector<8x8xf32>
      %151 = arith.truncf %150 : vector<8x8xf32> to vector<8x8xbf16>
      %c1_69 = arith.constant 1 : index
      %c1_70 = arith.constant 1 : index
      %c0_71 = arith.constant 0 : index
      %c0_72 = arith.constant 0 : index
      %152 = vector.load %arg15[%c1_69, %c1_70, %c0_71, %c0_72] : memref<2x4x8x8xbf16, #tpu.memory_space<vmem>>, vector<1x1x8x8xbf16>
      %153 = vector.shape_cast %152 : vector<1x1x8x8xbf16> to vector<8x8xbf16>
      %154 = vector.shape_cast %151 : vector<8x8xbf16> to vector<1x1x8x8xbf16>
      tpu.vector_store %arg15[%c1_69, %c1_70, %c0_71, %c0_72], %154 {strides = array<i32>} : memref<2x4x8x8xbf16, #tpu.memory_space<vmem>>, vector<1x1x8x8xbf16>,
      %155 = vector.extract_strided_slice %134 {offsets = [0, 16], sizes = [8, 8], strides = [1, 1]} : vector<8x64xf32> to vector<8x8xf32>
      %156 = arith.truncf %155 : vector<8x8xf32> to vector<8x8xbf16>
      %c0_73 = arith.constant 0 : index
      %c2 = arith.constant 2 : index
      %c0_74 = arith.constant 0 : index
      %c0_75 = arith.constant 0 : index
      %157 = vector.load %arg15[%c0_73, %c2, %c0_74, %c0_75] : memref<2x4x8x8xbf16, #tpu.memory_space<vmem>>, vector<1x1x8x8xbf16>
      %158 = vector.shape_cast %157 : vector<1x1x8x8xbf16> to vector<8x8xbf16>
      %159 = vector.shape_cast %156 : vector<8x8xbf16> to vector<1x1x8x8xbf16>
      tpu.vector_store %arg15[%c0_73, %c2, %c0_74, %c0_75], %159 {strides = array<i32>} : memref<2x4x8x8xbf16, #tpu.memory_space<vmem>>, vector<1x1x8x8xbf16>,
      %160 = vector.extract_strided_slice %134 {offsets = [0, 48], sizes = [8, 8], strides = [1, 1]} : vector<8x64xf32> to vector<8x8xf32>
      %161 = arith.truncf %160 : vector<8x8xf32> to vector<8x8xbf16>
      %c1_76 = arith.constant 1 : index
      %c2_77 = arith.constant 2 : index
      %c0_78 = arith.constant 0 : index
      %c0_79 = arith.constant 0 : index
      %162 = vector.load %arg15[%c1_76, %c2_77, %c0_78, %c0_79] : memref<2x4x8x8xbf16, #tpu.memory_space<vmem>>, vector<1x1x8x8xbf16>
      %163 = vector.shape_cast %162 : vector<1x1x8x8xbf16> to vector<8x8xbf16>
      %164 = vector.shape_cast %161 : vector<8x8xbf16> to vector<1x1x8x8xbf16>
      tpu.vector_store %arg15[%c1_76, %c2_77, %c0_78, %c0_79], %164 {strides = array<i32>} : memref<2x4x8x8xbf16, #tpu.memory_space<vmem>>, vector<1x1x8x8xbf16>,
      %165 = vector.extract_strided_slice %134 {offsets = [0, 24], sizes = [8, 8], strides = [1, 1]} : vector<8x64xf32> to vector<8x8xf32>
      %166 = arith.truncf %165 : vector<8x8xf32> to vector<8x8xbf16>
      %c0_80 = arith.constant 0 : index
      %c3 = arith.constant 3 : index
      %c0_81 = arith.constant 0 : index
      %c0_82 = arith.constant 0 : index
      %167 = vector.load %arg15[%c0_80, %c3, %c0_81, %c0_82] : memref<2x4x8x8xbf16, #tpu.memory_space<vmem>>, vector<1x1x8x8xbf16>
      %168 = vector.shape_cast %167 : vector<1x1x8x8xbf16> to vector<8x8xbf16>
      %169 = vector.shape_cast %166 : vector<8x8xbf16> to vector<1x1x8x8xbf16>
      tpu.vector_store %arg15[%c0_80, %c3, %c0_81, %c0_82], %169 {strides = array<i32>} : memref<2x4x8x8xbf16, #tpu.memory_space<vmem>>, vector<1x1x8x8xbf16>,
      %170 = vector.extract_strided_slice %134 {offsets = [0, 56], sizes = [8, 8], strides = [1, 1]} : vector<8x64xf32> to vector<8x8xf32>
      %171 = arith.truncf %170 : vector<8x8xf32> to vector<8x8xbf16>
      %c1_83 = arith.constant 1 : index
      %c3_84 = arith.constant 3 : index
      %c0_85 = arith.constant 0 : index
      %c0_86 = arith.constant 0 : index
      %172 = vector.load %arg15[%c1_83, %c3_84, %c0_85, %c0_86] : memref<2x4x8x8xbf16, #tpu.memory_space<vmem>>, vector<1x1x8x8xbf16>
      %173 = vector.shape_cast %172 : vector<1x1x8x8xbf16> to vector<8x8xbf16>
      %174 = vector.shape_cast %171 : vector<8x8xbf16> to vector<1x1x8x8xbf16>
      tpu.vector_store %arg15[%c1_83, %c3_84, %c0_85, %c0_86], %174 {strides = array<i32>} : memref<2x4x8x8xbf16, #tpu.memory_space<vmem>>, vector<1x1x8x8xbf16>,
    } else {
    }
    %c0 = arith.constant 0 : index
    %c0_1 = arith.constant 0 : index
    %3 = vector.load %arg12[%c0, %c0_1] : memref<8x32xf32, #tpu.memory_space<vmem>>, vector<8x32xf32>
    %4 = vector.extract_strided_slice %3 {offsets = [0, 0], sizes = [1, 32], strides = [1, 1]} : vector<8x32xf32> to vector<1x32xf32>
    %5 = vector.extract_strided_slice %3 {offsets = [1, 0], sizes = [1, 32], strides = [1, 1]} : vector<8x32xf32> to vector<1x32xf32>
    %6 = vector.extract_strided_slice %3 {offsets = [2, 0], sizes = [1, 32], strides = [1, 1]} : vector<8x32xf32> to vector<1x32xf32>
    %7 = vector.extract_strided_slice %3 {offsets = [3, 0], sizes = [1, 32], strides = [1, 1]} : vector<8x32xf32> to vector<1x32xf32>
    %8 = vector.extract_strided_slice %3 {offsets = [4, 0], sizes = [1, 32], strides = [1, 1]} : vector<8x32xf32> to vector<1x32xf32>
    %9 = vector.extract_strided_slice %3 {offsets = [5, 0], sizes = [1, 32], strides = [1, 1]} : vector<8x32xf32> to vector<1x32xf32>
    %10 = vector.extract_strided_slice %3 {offsets = [6, 0], sizes = [1, 32], strides = [1, 1]} : vector<8x32xf32> to vector<1x32xf32>
    %c0_2 = arith.constant 0 : index
    %c0_3 = arith.constant 0 : index
    %c0_4 = arith.constant 0 : index
    %11 = vector.load %arg2[%c0_2, %c0_3, %c0_4] : memref<1x8x32xf32, #tpu.memory_space<vmem>>, vector<1x8x32xf32>
    %12 = vector.shape_cast %11 : vector<1x8x32xf32> to vector<8x32xf32>
    %13 = arith.truncf %12 : vector<8x32xf32> to vector<8x32xbf16>
    %c0_5 = arith.constant 0 : index
    %c0_6 = arith.constant 0 : index
    %14 = vector.load %arg5[%c0_5, %c0_6] : memref<32x32xbf16, #tpu.memory_space<vmem>>, vector<32x32xbf16>
    %cst = arith.constant dense<0.000000e+00> : vector<8x32xf32>
    %15 = tpu.matmul %13, %14, %cst {dimension_numbers = #tpu.dot_dimension_numbers<[1], [0], [0], [1], [0, 0, 1, 1], [], []>} : vector<8x32xbf16>, vector<32x32xbf16>, vector<8x32xf32> -> vector<8x32xf32>
    %16 = vector.broadcast %4 : vector<1x32xf32> to vector<8x32xf32>
    %17 = arith.addf %15, %16 : vector<8x32xf32>
    %18 = vector.extract_strided_slice %17 {offsets = [0, 0], sizes = [8, 8], strides = [1, 1]} : vector<8x32xf32> to vector<8x8xf32>
    %19 = vector.extract_strided_slice %17 {offsets = [0, 8], sizes = [8, 8], strides = [1, 1]} : vector<8x32xf32> to vector<8x8xf32>
    %20 = vector.extract_strided_slice %17 {offsets = [0, 16], sizes = [8, 8], strides = [1, 1]} : vector<8x32xf32> to vector<8x8xf32>
    %21 = vector.extract_strided_slice %17 {offsets = [0, 24], sizes = [8, 8], strides = [1, 1]} : vector<8x32xf32> to vector<8x8xf32>
    %22 = vector.shape_cast %18 : vector<8x8xf32> to vector<1x8x8xf32>
    %23 = vector.shape_cast %19 : vector<8x8xf32> to vector<1x8x8xf32>
    %24 = vector.shape_cast %20 : vector<8x8xf32> to vector<1x8x8xf32>
    %25 = vector.shape_cast %21 : vector<8x8xf32> to vector<1x8x8xf32>
    %26 = tpu.concatenate %22, %23, %24, %25 in 0 : vector<1x8x8xf32>, vector<1x8x8xf32>, vector<1x8x8xf32>, vector<1x8x8xf32> -> vector<4x8x8xf32>
    %27 = arith.truncf %26 : vector<4x8x8xf32> to vector<4x8x8xbf16>
    %c0_7 = arith.constant 0 : index
    %c0_8 = arith.constant 0 : index
    %c0_9 = arith.constant 0 : index
    %c0_10 = arith.constant 0 : index
    %28 = vector.load %arg15[%c0_7, %c0_8, %c0_9, %c0_10] : memref<2x4x8x8xbf16, #tpu.memory_space<vmem>>, vector<1x4x8x8xbf16>
    %29 = vector.shape_cast %28 : vector<1x4x8x8xbf16> to vector<4x8x8xbf16>
    %c1 = arith.constant 1 : index
    %c0_11 = arith.constant 0 : index
    %c0_12 = arith.constant 0 : index
    %c0_13 = arith.constant 0 : index
    %30 = vector.load %arg15[%c1, %c0_11, %c0_12, %c0_13] : memref<2x4x8x8xbf16, #tpu.memory_space<vmem>>, vector<1x4x8x8xbf16>
    %31 = vector.shape_cast %30 : vector<1x4x8x8xbf16> to vector<4x8x8xbf16>
    "tpu.trace_start"() <{level = 10 : i32, message = "hqd,hkd->hqk"}> : () -> ()
    %cst_14 = arith.constant dense<0.000000e+00> : vector<4x8x8xf32>
    %32 = tpu.matmul %27, %29, %cst_14 {dimension_numbers = #tpu.dot_dimension_numbers<[2], [2], [1], [1], [0, 0, 0, 1, 1, 1], [0], [0]>} : vector<4x8x8xbf16>, vector<4x8x8xbf16>, vector<4x8x8xf32> -> vector<4x8x8xf32>
    "tpu.trace_stop"() : () -> ()
    %c0_15 = arith.constant 0 : index
    %c0_16 = arith.constant 0 : index
    %c0_17 = arith.constant 0 : index
    %33 = vector.load %arg4[%c0_15, %c0_16, %c0_17] : memref<4x8x8xbf16, #tpu.memory_space<vmem>>, vector<4x8x8xbf16>
    %34 = arith.extf %33 : vector<4x8x8xbf16> to vector<4x8x8xf32>
    %35 = arith.addf %32, %34 : vector<4x8x8xf32>
    %cst_18 = arith.constant dense<0xFF800000> : vector<4x8xf32>
    %36 = vector.multi_reduction <maximumf>, %35, %cst_18 [2] : vector<4x8x8xf32> to vector<4x8xf32>
    %37 = vector.shape_cast %36 : vector<4x8xf32> to vector<4x8x1xf32>
    %38 = vector.broadcast %37 : vector<4x8x1xf32> to vector<4x8x8xf32>
    %39 = arith.subf %35, %38 : vector<4x8x8xf32>
    %40 = math.exp %39 : vector<4x8x8xf32>
    %cst_19 = arith.constant dense<0.000000e+00> : vector<4x8xf32>
    %41 = vector.multi_reduction <add>, %40, %cst_19 [2] : vector<4x8x8xf32> to vector<4x8xf32>
    %42 = vector.shape_cast %41 : vector<4x8xf32> to vector<4x8x1xf32>
    %43 = tpu.reciprocal %42 {approx = true} : vector<4x8x1xf32> -> vector<4x8x1xf32>
    %44 = vector.broadcast %43 : vector<4x8x1xf32> to vector<4x8x8xf32>
    %45 = arith.mulf %40, %44 : vector<4x8x8xf32>
    %46 = arith.truncf %45 : vector<4x8x8xf32> to vector<4x8x8xbf16>
    "tpu.trace_start"() <{level = 10 : i32, message = "hqk,hkd->hqd"}> : () -> ()
    %cst_20 = arith.constant dense<0.000000e+00> : vector<4x8x8xf32>
    %47 = tpu.matmul %46, %31, %cst_20 {dimension_numbers = #tpu.dot_dimension_numbers<[2], [1], [1], [2], [0, 0, 0, 1, 1, 2], [0], [0]>} : vector<4x8x8xbf16>, vector<4x8x8xbf16>, vector<4x8x8xf32> -> vector<4x8x8xf32>
    "tpu.trace_stop"() : () -> ()
    %48 = vector.extract_strided_slice %47 {offsets = [0, 0, 0], sizes = [1, 8, 8], strides = [1, 1, 1]} : vector<4x8x8xf32> to vector<1x8x8xf32>
    %49 = vector.shape_cast %48 : vector<1x8x8xf32> to vector<8x8xf32>
    %50 = vector.extract_strided_slice %47 {offsets = [1, 0, 0], sizes = [1, 8, 8], strides = [1, 1, 1]} : vector<4x8x8xf32> to vector<1x8x8xf32>
    %51 = vector.shape_cast %50 : vector<1x8x8xf32> to vector<8x8xf32>
    %52 = vector.extract_strided_slice %47 {offsets = [2, 0, 0], sizes = [1, 8, 8], strides = [1, 1, 1]} : vector<4x8x8xf32> to vector<1x8x8xf32>
    %53 = vector.shape_cast %52 : vector<1x8x8xf32> to vector<8x8xf32>
    %54 = vector.extract_strided_slice %47 {offsets = [3, 0, 0], sizes = [1, 8, 8], strides = [1, 1, 1]} : vector<4x8x8xf32> to vector<1x8x8xf32>
    %55 = vector.shape_cast %54 : vector<1x8x8xf32> to vector<8x8xf32>
    %56 = tpu.concatenate %49, %51, %53, %55 in 1 : vector<8x8xf32>, vector<8x8xf32>, vector<8x8xf32>, vector<8x8xf32> -> vector<8x32xf32>
    %57 = arith.truncf %56 : vector<8x32xf32> to vector<8x32xbf16>
    %c0_21 = arith.constant 0 : index
    %c0_22 = arith.constant 0 : index
    %58 = vector.load %arg8[%c0_21, %c0_22] : memref<32x32xbf16, #tpu.memory_space<vmem>>, vector<32x32xbf16>
    %cst_23 = arith.constant dense<0.000000e+00> : vector<8x32xf32>
    %59 = tpu.matmul %57, %58, %cst_23 {dimension_numbers = #tpu.dot_dimension_numbers<[1], [0], [0], [1], [0, 0, 1, 1], [], []>} : vector<8x32xbf16>, vector<32x32xbf16>, vector<8x32xf32> -> vector<8x32xf32>
    %60 = vector.broadcast %5 : vector<1x32xf32> to vector<8x32xf32>
    %61 = arith.addf %59, %60 : vector<8x32xf32>
    %62 = arith.addf %12, %61 : vector<8x32xf32>
    %cst_24 = arith.constant dense<0.000000e+00> : vector<8xf32>
    %63 = vector.multi_reduction <add>, %62, %cst_24 [1] : vector<8x32xf32> to vector<8xf32>
    %64 = vector.shape_cast %63 : vector<8xf32> to vector<8x1xf32>
    %cst_25 = arith.constant 3.200000e+01 : f32
    %65 = vector.broadcast %cst_25 : f32 to vector<8x1xf32>
    %66 = arith.divf %64, %65 : vector<8x1xf32>
    %67 = vector.broadcast %66 : vector<8x1xf32> to vector<8x32xf32>
    %68 = arith.subf %62, %67 : vector<8x32xf32>
    %69 = arith.mulf %68, %68 : vector<8x32xf32>
    %cst_26 = arith.constant dense<0.000000e+00> : vector<8xf32>
    %70 = vector.multi_reduction <add>, %69, %cst_26 [1] : vector<8x32xf32> to vector<8xf32>
    %71 = vector.shape_cast %70 : vector<8xf32> to vector<8x1xf32>
    %cst_27 = arith.constant 3.200000e+01 : f32
    %72 = vector.broadcast %cst_27 : f32 to vector<8x1xf32>
    %73 = arith.divf %71, %72 : vector<8x1xf32>
    %74 = vector.broadcast %66 : vector<8x1xf32> to vector<8x32xf32>
    %75 = arith.subf %62, %74 : vector<8x32xf32>
    %cst_28 = arith.constant 9.99999974E-6 : f32
    %76 = vector.broadcast %cst_28 : f32 to vector<8x1xf32>
    %77 = arith.addf %73, %76 : vector<8x1xf32>
    %78 = math.rsqrt %77 : vector<8x1xf32>
    %79 = vector.broadcast %78 : vector<8x1xf32> to vector<8x32xf32>
    %80 = arith.mulf %75, %79 : vector<8x32xf32>
    %81 = vector.broadcast %7 : vector<1x32xf32> to vector<8x32xf32>
    %82 = arith.mulf %80, %81 : vector<8x32xf32>
    %83 = vector.broadcast %8 : vector<1x32xf32> to vector<8x32xf32>
    %84 = arith.addf %82, %83 : vector<8x32xf32>
    %85 = arith.truncf %84 : vector<8x32xf32> to vector<8x32xbf16>
    %c0_29 = arith.constant 0 : index
    %c0_30 = arith.constant 0 : index
    %86 = vector.load %arg9[%c0_29, %c0_30] : memref<32x64xbf16, #tpu.memory_space<vmem>>, vector<32x64xbf16>
    %cst_31 = arith.constant dense<0.000000e+00> : vector<8x64xf32>
    %87 = tpu.matmul %85, %86, %cst_31 {dimension_numbers = #tpu.dot_dimension_numbers<[1], [0], [0], [1], [0, 0, 1, 1], [], []>} : vector<8x32xbf16>, vector<32x64xbf16>, vector<8x64xf32> -> vector<8x64xf32>
    %c0_32 = arith.constant 0 : index
    %c0_33 = arith.constant 0 : index
    %88 = vector.load %arg10[%c0_32, %c0_33] : memref<1x64xf32, #tpu.memory_space<vmem>>, vector<1x64xf32>
    %89 = vector.broadcast %88 : vector<1x64xf32> to vector<8x64xf32>
    %90 = arith.addf %87, %89 : vector<8x64xf32>
    %cst_34 = arith.constant 0.000000e+00 : f32
    %91 = vector.broadcast %cst_34 : f32 to vector<8x64xf32>
    %92 = arith.maximumf %90, %91 : vector<8x64xf32>
    %93 = arith.truncf %92 : vector<8x64xf32> to vector<8x64xbf16>
    %c0_35 = arith.constant 0 : index
    %c0_36 = arith.constant 0 : index
    %94 = vector.load %arg11[%c0_35, %c0_36] : memref<64x32xbf16, #tpu.memory_space<vmem>>, vector<64x32xbf16>
    %cst_37 = arith.constant dense<0.000000e+00> : vector<8x32xf32>
    %95 = tpu.matmul %93, %94, %cst_37 {dimension_numbers = #tpu.dot_dimension_numbers<[1], [0], [0], [1], [0, 0, 1, 1], [], []>} : vector<8x64xbf16>, vector<64x32xbf16>, vector<8x32xf32> -> vector<8x32xf32>
    %96 = vector.broadcast %6 : vector<1x32xf32> to vector<8x32xf32>
    %97 = arith.addf %95, %96 : vector<8x32xf32>
    %98 = arith.addf %84, %97 : vector<8x32xf32>
    %cst_38 = arith.constant dense<0.000000e+00> : vector<8xf32>
    %99 = vector.multi_reduction <add>, %98, %cst_38 [1] : vector<8x32xf32> to vector<8xf32>
    %100 = vector.shape_cast %99 : vector<8xf32> to vector<8x1xf32>
    %cst_39 = arith.constant 3.200000e+01 : f32
    %101 = vector.broadcast %cst_39 : f32 to vector<8x1xf32>
    %102 = arith.divf %100, %101 : vector<8x1xf32>
    %103 = vector.broadcast %102 : vector<8x1xf32> to vector<8x32xf32>
    %104 = arith.subf %98, %103 : vector<8x32xf32>
    %105 = arith.mulf %104, %104 : vector<8x32xf32>
    %cst_40 = arith.constant dense<0.000000e+00> : vector<8xf32>
    %106 = vector.multi_reduction <add>, %105, %cst_40 [1] : vector<8x32xf32> to vector<8xf32>
    %107 = vector.shape_cast %106 : vector<8xf32> to vector<8x1xf32>
    %cst_41 = arith.constant 3.200000e+01 : f32
    %108 = vector.broadcast %cst_41 : f32 to vector<8x1xf32>
    %109 = arith.divf %107, %108 : vector<8x1xf32>
    %110 = vector.broadcast %102 : vector<8x1xf32> to vector<8x32xf32>
    %111 = arith.subf %98, %110 : vector<8x32xf32>
    %cst_42 = arith.constant 9.99999974E-6 : f32
    %112 = vector.broadcast %cst_42 : f32 to vector<8x1xf32>
    %113 = arith.addf %109, %112 : vector<8x1xf32>
    %114 = math.rsqrt %113 : vector<8x1xf32>
    %115 = vector.broadcast %114 : vector<8x1xf32> to vector<8x32xf32>
    %116 = arith.mulf %111, %115 : vector<8x32xf32>
    %117 = vector.broadcast %9 : vector<1x32xf32> to vector<8x32xf32>
    %118 = arith.mulf %116, %117 : vector<8x32xf32>
    %119 = vector.broadcast %10 : vector<1x32xf32> to vector<8x32xf32>
    %120 = arith.addf %118, %119 : vector<8x32xf32>
    %c0_43 = arith.constant 0 : index
    %c0_44 = arith.constant 0 : index
    %c0_45 = arith.constant 0 : index
    %121 = vector.load %arg13[%c0_43, %c0_44, %c0_45] : memref<1x8x32xf32, #tpu.memory_space<vmem>>, vector<1x8x32xf32>
    %122 = vector.shape_cast %121 : vector<1x8x32xf32> to vector<8x32xf32>
    %123 = vector.shape_cast %120 : vector<8x32xf32> to vector<1x8x32xf32>
    tpu.vector_store %arg13[%c0_43, %c0_44, %c0_45], %123 {strides = array<i32>} : memref<1x8x32xf32, #tpu.memory_space<vmem>>, vector<1x8x32xf32>,
    %124 = arith.truncf %120 : vector<8x32xf32> to vector<8x32xbf16>
    %c0_46 = arith.constant 0 : index
    %c0_47 = arith.constant 0 : index
    %c0_48 = arith.constant 0 : index
    %125 = vector.load %arg14[%c0_46, %c0_47, %c0_48] : memref<1x8x32xbf16, #tpu.memory_space<vmem>>, vector<1x8x32xbf16>
    %126 = vector.shape_cast %125 : vector<1x8x32xbf16> to vector<8x32xbf16>
    %127 = vector.shape_cast %124 : vector<8x32xbf16> to vector<1x8x32xbf16>
    tpu.vector_store %arg14[%c0_46, %c0_47, %c0_48], %127 {strides = array<i32>} : memref<1x8x32xbf16, #tpu.memory_space<vmem>>, vector<1x8x32xbf16>,
    return
  }
  func.func @transform_0(%arg0: i32, %arg1: i32) -> (i32, i32, i32) {
    %c0_i32 = arith.constant 0 : i32
    %c0_i32_0 = arith.constant 0 : i32
    return %arg0, %arg1, %c0_i32 : i32, i32, i32
  }
  func.func @transform_1(%arg0: i32, %arg1: i32) -> (i32, i32, i32) {
    %c0_i32 = arith.constant 0 : i32
    %c0_i32_0 = arith.constant 0 : i32
    %c0_i32_1 = arith.constant 0 : i32
    return %arg0, %c0_i32, %c0_i32_0 : i32, i32, i32
  }
  func.func @transform_2(%arg0: i32, %arg1: i32) -> (i32, i32, i32) {
    %c0_i32 = arith.constant 0 : i32
    %c0_i32_0 = arith.constant 0 : i32
    return %arg0, %arg1, %c0_i32 : i32, i32, i32
  }
  func.func @transform_3(%arg0: i32, %arg1: i32) -> (i32, i32) {
    %c0_i32 = arith.constant 0 : i32
    %c0_i32_0 = arith.constant 0 : i32
    %c0_i32_1 = arith.constant 0 : i32
    return %c0_i32, %c0_i32_0 : i32, i32
  }
  func.func @transform_4(%arg0: i32, %arg1: i32) -> (i32, i32) {
    %c0_i32 = arith.constant 0 : i32
    %c0_i32_0 = arith.constant 0 : i32
    %c0_i32_1 = arith.constant 0 : i32
    return %c0_i32, %c0_i32_0 : i32, i32
  }
  func.func @transform_5(%arg0: i32, %arg1: i32) -> (i32, i32) {
    %c0_i32 = arith.constant 0 : i32
    %c0_i32_0 = arith.constant 0 : i32
    %c0_i32_1 = arith.constant 0 : i32
    return %c0_i32, %c0_i32_0 : i32, i32
  }
  func.func @transform_6(%arg0: i32, %arg1: i32) -> (i32, i32) {
    %c0_i32 = arith.constant 0 : i32
    %c0_i32_0 = arith.constant 0 : i32
    %c0_i32_1 = arith.constant 0 : i32
    return %c0_i32, %c0_i32_0 : i32, i32
  }
  func.func @transform_7(%arg0: i32, %arg1: i32) -> (i32, i32) {
    %c0_i32 = arith.constant 0 : i32
    %c0_i32_0 = arith.constant 0 : i32
    %c0_i32_1 = arith.constant 0 : i32
    return %c0_i32, %c0_i32_0 : i32, i32
  }
  func.func @transform_8(%arg0: i32, %arg1: i32) -> (i32, i32) {
    %c0_i32 = arith.constant 0 : i32
    %c0_i32_0 = arith.constant 0 : i32
    %c0_i32_1 = arith.constant 0 : i32
    return %c0_i32, %c0_i32_0 : i32, i32
  }
  func.func @transform_9(%arg0: i32, %arg1: i32) -> (i32, i32) {
    %c0_i32 = arith.constant 0 : i32
    %c0_i32_0 = arith.constant 0 : i32
    %c0_i32_1 = arith.constant 0 : i32
    return %c0_i32, %c0_i32_0 : i32, i32
  }
  func.func @transform_10(%arg0: i32, %arg1: i32) -> (i32, i32) {
    %c0_i32 = arith.constant 0 : i32
    %c0_i32_0 = arith.constant 0 : i32
    %c0_i32_1 = arith.constant 0 : i32
    return %c0_i32, %c0_i32_0 : i32, i32
  }
  func.func @transform_11(%arg0: i32, %arg1: i32) -> (i32, i32, i32) {
    %c0_i32 = arith.constant 0 : i32
    %c0_i32_0 = arith.constant 0 : i32
    return %arg0, %arg1, %c0_i32 : i32, i32, i32
  }
  func.func @transform_12(%arg0: i32, %arg1: i32) -> (i32, i32, i32) {
    %c0_i32 = arith.constant 0 : i32
    %c0_i32_0 = arith.constant 0 : i32
    return %arg0, %arg1, %c0_i32 : i32, i32, i32
  }
}

</mosaic_0001>

<llo_original>
// kernel: tpu_custom_call.1
$region0: #{tpu_custom_call.1}
  #allocation0 [shape = 'u32[]', space=smem, size = 0x4, offset = 0x4, fixed_abs, tag = 'smem constant byte address 0x4 - core index']
  #allocation1 [shape = 'u32[144,128]{1,0:T(1,128)}', space=vmem, size = 0x12000, scoped, tag = 'internal scratch']
  %s0 = inlined_call_operand.hbm [shape: f32[8,128], index: 0, kind: input, shape index: {}]
  %s1 = inlined_call_operand.hbm [shape: f32[8,128], index: 1, kind: output, shape index: {}]
  %s2 = sld [smem:[#allocation0]]
  $region41: #{tpu_custom_call.1} parent=0
    _
  %s4 = ssub.s32 1, %s2
  %s5 = scalar_select 0, %s4, %s2
  $region1: #{tpu_custom_call.1} parent=0
    #allocation2 [shape = 'u8[4096]{0}', space=vmem, size = 0x1000, scoped, tag = 'input window, operand 0, single buffered']
    #allocation3 [shape = 's32[2]{0}', space=sflag, size = 0x8, scoped, tag = 'scoped memory for tpu_custom_call.1']
    #allocation4 [shape = 's32[2]{0}', space=sflag, size = 0x8, scoped, tag = 'scoped memory for tpu_custom_call.1']
    #allocation5 [shape = 'u8[4096]{0}', space=vmem, size = 0x1000, scoped, tag = 'output window, operand 0, single buffered']
    %6 = vsyncpa [#allocation3], 0
    %7 = vsyncpa [#allocation4], 0
    loop: start=0, step=1, limit=4
    $region2: #{tpu_custom_call.1} parent=1 // loop_pre_header
      _
    $region3: #{tpu_custom_call.1} parent=1 // loop_header
      %s9 = sphi 0, %s13
      %p10 = scmp.ge.s32.totalorder %s9, 4
      %s17 = sphi 0, %s17
      %s19 = sphi 0, %s17
      %s20 = sphi 0, %s19
      %s34 = sphi 0, %s20
      %s38 = sphi 0, %s38
      %s40 = sphi 0, %s38
      %s41 = sphi 0, %s40
      %s55 = sphi 0, %s41
    $region4: #{tpu_custom_call.1} parent=1 // loop_header_branch
      %12 = sbr.rel (%p10) target = $region8
    $region5: #{tpu_custom_call.1} parent=1 // loop_body
      %s14 = ssub.s32 %s9, 1
      %s15 = ssub.s32 %s9, 2
      %s16 = sadd.s32 %s9, 1
      %s18 = sadd.s32 %s17, 1
      %p21 = scmp.eq.s32.totalorder %s9, 1
      %p22 = scmp.ne.s32.totalorder %s17, %s19
      %p23 = scmp.eq.s32.totalorder %s9, 0
      %p24 = por %p22, %p23
      %p25 = scmp.ne.s32.totalorder %s17, %s19
      %p26 = scmp.eq.s32.totalorder %s14, 1
      %p27 = por %p25, %p26
      %p28 = scmp.ne.s32.totalorder %s19, %s20
      %p29 = scmp.eq.s32.totalorder %s14, 0
      %p30 = por %p28, %p29
      %p31 = scmp.ne.s32.totalorder %s19, %s20
      %p32 = scmp.eq.s32.totalorder %s15, 1
      %p33 = por %p31, %p32
      %p35 = scmp.ne.s32.totalorder %s20, %s34
      %p36 = scmp.eq.s32.totalorder %s15, 0
      %p37 = por %p35, %p36
      %s39 = sadd.s32 %s38, 1
      %p42 = scmp.eq.s32.totalorder %s9, 1
      %p43 = scmp.ne.s32.totalorder %s38, %s40
      %p44 = scmp.eq.s32.totalorder %s9, 0
      %p45 = por %p43, %p44
      %p46 = scmp.ne.s32.totalorder %s38, %s40
      %p47 = scmp.eq.s32.totalorder %s14, 1
      %p48 = por %p46, %p47
      %p49 = scmp.ne.s32.totalorder %s40, %s41
      %p50 = scmp.eq.s32.totalorder %s14, 0
      %p51 = por %p49, %p50
      %p52 = scmp.ne.s32.totalorder %s40, %s41
      %p53 = scmp.eq.s32.totalorder %s15, 1
      %p54 = por %p52, %p53
      %p56 = scmp.ne.s32.totalorder %s41, %s55
      %p57 = scmp.eq.s32.totalorder %s15, 0
      %p58 = por %p56, %p57
      %p59 = scmp.le.s32.totalorder 1, %s9
      %p60 = scmp.lt.s32.totalorder %s9, 3
      %p61 = pnand %p59, %p60
      %p62 = pneg %p61
      // Predicated region
      $region9: #{tpu_custom_call.1} parent=5 // pred_check
        _
      $region10: #{tpu_custom_call.1} parent=5 // pred_check_branch
        %64 = sbr.rel (%p61) target = $region12
      $region11: #{tpu_custom_call.1} parent=5 // pred_region
        %s65 = ssub.s32 %s9, 1
        // Predicated region
        $region13: #{tpu_custom_call.1} parent=11 // pred_check
          %p66 = pneg %p30
        $region14: #{tpu_custom_call.1} parent=11 // pred_check_branch
          %68 = sbr.rel (%p66) target = $region16
        $region15: #{tpu_custom_call.1} parent=11 // pred_region
          %s70 = ssub.s32 128, 128
          %71 = vsyncadd [#allocation3], %s70
          %s73 = sshll.u32 [#allocation2], 4
          %s74 = int_to_ptr.vmem [resolvable:$true] %s73
          %76 = dma.hbm_to_vmem [thread:$0]  %s0, 128, %s74, [#allocation3]
        $region16: #{tpu_custom_call.1} parent=11 // pred_fallthru
          _
      $region12: #{tpu_custom_call.1} parent=5 // pred_fallthru
        _
      %p77 = scmp.lt.s32.totalorder %s9, 2
      // Predicated region
      $region17: #{tpu_custom_call.1} parent=5 // pred_check
        %p78 = pneg %p77
      $region18: #{tpu_custom_call.1} parent=5 // pred_check_branch
        %80 = sbr.rel (%p78) target = $region20
      $region19: #{tpu_custom_call.1} parent=5 // pred_region
        _
      $region20: #{tpu_custom_call.1} parent=5 // pred_fallthru
        _
      %p81 = scmp.le.s32.totalorder 1, %s9
      %p82 = scmp.lt.s32.totalorder %s9, 3
      %p83 = pnand %p81, %p82
      %p84 = pneg %p83
      // Predicated region
      $region21: #{tpu_custom_call.1} parent=5 // pred_check
        _
      $region22: #{tpu_custom_call.1} parent=5 // pred_check_branch
        %86 = sbr.rel (%p83) target = $region24
      $region23: #{tpu_custom_call.1} parent=5 // pred_region
        %s87 = ssub.s32 %s9, 1
        // Predicated region
        $region25: #{tpu_custom_call.1} parent=23 // pred_check
          %p88 = pneg %p30
        $region26: #{tpu_custom_call.1} parent=23 // pred_check_branch
          %90 = sbr.rel (%p88) target = $region28
        $region27: #{tpu_custom_call.1} parent=23 // pred_region
          %91 = dma.done [#allocation3], 128
        $region28: #{tpu_custom_call.1} parent=23 // pred_fallthru
          _
        %p92 = pneg %p30
        %p93 = pneg %p27
        %p94 = pneg %p51
        %p95 = pneg %p48
        %v96 = vld [vmem:[#allocation2] sm:$0xff]
        %v97 = vadd.f32 %v96, 1.0
        %98 = vst [vmem:[#allocation5] sm:$0xff] %v97
        // Predicated region
        $region29: #{tpu_custom_call.1} parent=23 // pred_check
          %p99 = pneg %p48
        $region30: #{tpu_custom_call.1} parent=23 // pred_check_branch
          %101 = sbr.rel (%p99) target = $region32
        $region31: #{tpu_custom_call.1} parent=23 // pred_region
          %s103 = ssub.s32 128, 128
          %104 = vsyncadd [#allocation4], %s103
          %s106 = sshll.u32 [#allocation5], 4
          %s107 = int_to_ptr.vmem [resolvable:$true] %s106
          %109 = dma.vmem_to_hbm [thread:$0]  %s107, 128, %s1, [#allocation4]
        $region32: #{tpu_custom_call.1} parent=23 // pred_fallthru
          _
        // Predicated region
        $region33: #{tpu_custom_call.1} parent=23 // pred_check
          %p110 = pneg %p48
        $region34: #{tpu_custom_call.1} parent=23 // pred_check_branch
          %112 = sbr.rel (%p110) target = $region36
        $region35: #{tpu_custom_call.1} parent=23 // pred_region
          %113 = dma.done [#allocation4], 128
        $region36: #{tpu_custom_call.1} parent=23 // pred_fallthru
          _
      $region24: #{tpu_custom_call.1} parent=5 // pred_fallthru
        _
      %p114 = scmp.le.s32.totalorder 2, %s9
      // Predicated region
      $region37: #{tpu_custom_call.1} parent=5 // pred_check
        %p115 = pneg %p114
      $region38: #{tpu_custom_call.1} parent=5 // pred_check_branch
        %117 = sbr.rel (%p115) target = $region40
      $region39: #{tpu_custom_call.1} parent=5 // pred_region
        %s118 = ssub.s32 %s9, 2
      $region40: #{tpu_custom_call.1} parent=5 // pred_fallthru
        _
    $region6: #{tpu_custom_call.1} parent=1 // loop_footer
      %s13 = sadd.s32 1, %s9
    $region7: #{tpu_custom_call.1} parent=1 // loop_footer_branch
      %8 = sbr.rel target = $region3
    $region8: #{tpu_custom_call.1} parent=1 // loop_exit
      _
    %119 = vsyncpa [#allocation3], 1
    %s120 = scalar_lea.sflag [#allocation3], 1
    %121 = vsyncpa %s120, 1
    %122 = vsyncpa [#allocation4], 1
    %s123 = scalar_lea.sflag [#allocation4], 1
    %124 = vsyncpa %s123, 1

// kernel: tpu_custom_call.1
$region0: #{tpu_custom_call.1}
  #allocation0 [shape = 'u32[]', space=smem, size = 0x4, offset = 0x4, fixed_abs, tag = 'smem constant byte address 0x4 - core index']
  #allocation1 [shape = 'u32[144,128]{1,0:T(1,128)}', space=vmem, size = 0x12000, scoped, tag = 'internal scratch']
  #allocation2 [shape = 'bf16[2,4,8,8]{3,2,1,0:T(8,128)(2,1)}', space=vmem, size = 0x4000, scoped, tag = 'scratch operand']
  %s0 = inlined_call_operand.vmem [shape: f32[2,8,32], index: 0, kind: input, shape index: {}]
  %s1 = inlined_call_operand.hbm [shape: bf16[2,8,32], index: 1, kind: input, shape index: {}]
  %s2 = inlined_call_operand.vmem [shape: bf16[8,8,8], index: 2, kind: input, shape index: {}]
  %s3 = inlined_call_operand.hbm [shape: bf16[32,32], index: 3, kind: input, shape index: {}]
  %s4 = inlined_call_operand.hbm [shape: bf16[32,64], index: 4, kind: input, shape index: {}]
  %s5 = inlined_call_operand.hbm [shape: f32[1,64], index: 5, kind: input, shape index: {}]
  %s6 = inlined_call_operand.hbm [shape: bf16[32,32], index: 6, kind: input, shape index: {}]
  %s7 = inlined_call_operand.hbm [shape: bf16[32,64], index: 7, kind: input, shape index: {}]
  %s8 = inlined_call_operand.hbm [shape: f32[1,64], index: 8, kind: input, shape index: {}]
  %s9 = inlined_call_operand.vmem [shape: bf16[64,32], index: 9, kind: input, shape index: {}]
  %s10 = inlined_call_operand.hbm [shape: f32[8,32], index: 10, kind: input, shape index: {}]
  %s11 = inlined_call_operand.hbm [shape: f32[2,8,32], index: 11, kind: output, shape index: {0}]
  %s12 = inlined_call_operand.hbm [shape: bf16[2,8,32], index: 12, kind: output, shape index: {1}]
  %13 = xla_tuple %s11, %s12
  %s14 = sld [smem:[#allocation0]]
  $region121: #{tpu_custom_call.1} parent=0
    _
  %s16 = ssub.s32 1, %s14
  %s17 = scalar_select 0, %s16, %s14
  $region1: #{tpu_custom_call.1} parent=0
    #allocation3 [shape = 'u8[4096]{0}', space=vmem, size = 0x1000, scoped, tag = 'input window, operand 1']
    #allocation4 [shape = 's32[2]{0}', space=sflag, size = 0x8, scoped, tag = 'scoped memory for tpu_custom_call.1']
    #allocation5 [shape = 's32[2]{0}', space=sflag, size = 0x8, scoped, tag = 'scoped memory for tpu_custom_call.1']
    #allocation6 [shape = 'u8[8192]{0}', space=vmem, size = 0x2000, scoped, tag = 'input window, operand 3, single buffered']
    #allocation7 [shape = 's32[1]{0}', space=sflag, size = 0x4, scoped, tag = 'scoped memory for tpu_custom_call.1']
    #allocation8 [shape = 'u8[8192]{0}', space=vmem, size = 0x2000, scoped, tag = 'input window, operand 4, single buffered']
    #allocation9 [shape = 'u8[512]{0}', space=vmem, size = 0x400, scoped, tag = 'input window, operand 5, single buffered']
    #allocation10 [shape = 's32[1]{0}', space=sflag, size = 0x4, scoped, tag = 'scoped memory for tpu_custom_call.1']
    #allocation11 [shape = 'u8[8192]{0}', space=vmem, size = 0x2000, scoped, tag = 'input window, operand 6, single buffered']
    #allocation12 [shape = 'u8[8192]{0}', space=vmem, size = 0x2000, scoped, tag = 'input window, operand 7, single buffered']
    #allocation13 [shape = 's32[1]{0}', space=sflag, size = 0x4, scoped, tag = 'scoped memory for tpu_custom_call.1']
    #allocation14 [shape = 'u8[512]{0}', space=vmem, size = 0x400, scoped, tag = 'input window, operand 8, single buffered']
    #allocation15 [shape = 'u8[4096]{0}', space=vmem, size = 0x1000, scoped, tag = 'input window, operand 10, single buffered']
    #allocation16 [shape = 's32[1]{0}', space=sflag, size = 0x4, scoped, tag = 'scoped memory for tpu_custom_call.1']
    #allocation17 [shape = 'u8[8192]{0}', space=vmem, size = 0x2000, scoped, tag = 'output window, operand 0']
    #allocation18 [shape = 'u8[4096]{0}', space=vmem, size = 0x1000, scoped, tag = 'output window, operand 1']
    #allocation19 [shape = 's32[2]{0}', space=sflag, size = 0x8, scoped, tag = 'scoped memory for tpu_custom_call.1']
    %18 = vsyncpa [#allocation4], 0
    %s19 = scalar_lea.sflag [#allocation4], 1
    %20 = vsyncpa %s19, 0
    %21 = vsyncpa [#allocation7], 0
    %22 = vsyncpa [#allocation10], 0
    %23 = vsyncpa [#allocation13], 0
    %24 = vsyncpa [#allocation16], 0
    %25 = vsyncpa [#allocation5], 0
    %s26 = scalar_lea.sflag [#allocation5], 1
    %27 = vsyncpa %s26, 0
    %28 = vsyncpa [#allocation19], 0
    %s29 = scalar_lea.sflag [#allocation19], 1
    %30 = vsyncpa %s29, 0
    loop: start=0, step=1, limit=4
    $region2: #{tpu_custom_call.1} parent=1 // loop_pre_header
      _
    $region3: #{tpu_custom_call.1} parent=1 // loop_header
      %s32 = sphi 0, %s36
      %p33 = scmp.ge.s32.totalorder %s32, 4
      %s39 = sphi 0, %s51
      %s40 = sphi 0, %s47
      %s41 = sphi 0, %s39
      %s42 = sphi 0, %s40
      %s43 = sphi 0, %s41
      %s44 = sphi 0, %s42
      %s56 = sphi 0, %s58
      %s59 = sphi 0, %s56
      %s60 = sphi 0, %s59
      %s76 = sphi 0, %s60
      %s82 = sphi 0, %s84
      %s85 = sphi 0, %s82
      %s86 = sphi 0, %s85
      %s102 = sphi 0, %s86
      %s110 = sphi 0, %s112
      %s113 = sphi 0, %s110
      %s114 = sphi 0, %s113
      %s130 = sphi 0, %s114
      %s134 = sphi 0, %s134
      %s136 = sphi 0, %s134
      %s137 = sphi 0, %s136
      %s151 = sphi 0, %s137
      %s155 = sphi 0, %s155
      %s157 = sphi 0, %s155
      %s158 = sphi 0, %s157
      %s172 = sphi 0, %s158
      %s176 = sphi 0, %s176
      %s178 = sphi 0, %s176
      %s179 = sphi 0, %s178
      %s193 = sphi 0, %s179
      %s197 = sphi 0, %s197
      %s199 = sphi 0, %s197
      %s200 = sphi 0, %s199
      %s214 = sphi 0, %s200
      %s218 = sphi 0, %s218
      %s220 = sphi 0, %s218
      %s221 = sphi 0, %s220
      %s235 = sphi 0, %s221
      %s239 = sphi 0, %s239
      %s241 = sphi 0, %s239
      %s242 = sphi 0, %s241
      %s256 = sphi 0, %s242
      %s260 = sphi 0, %s260
      %s262 = sphi 0, %s260
      %s263 = sphi 0, %s262
      %s277 = sphi 0, %s263
      %s281 = sphi 0, %s281
      %s283 = sphi 0, %s281
      %s284 = sphi 0, %s283
      %s298 = sphi 0, %s284
      %s306 = sphi 0, %s308
      %s309 = sphi 0, %s306
      %s310 = sphi 0, %s309
      %s326 = sphi 0, %s310
      %s334 = sphi 0, %s336
      %s337 = sphi 0, %s334
      %s338 = sphi 0, %s337
      %s354 = sphi 0, %s338
    $region4: #{tpu_custom_call.1} parent=1 // loop_header_branch
      %35 = sbr.rel (%p33) target = $region8
    $region5: #{tpu_custom_call.1} parent=1 // loop_body
      %s37 = ssub.s32 %s32, 1
      %s38 = ssub.s32 %s32, 2
      %s45 = sadd.s32 1, %s40
      %p46 = scmp.ge.s32.totalorder %s45, 1
      %s47 = scalar_select %p46, 0, %s45
      %s48 = sadd.s32 1, %s39
      %s49 = scalar_select %p46, %s48, %s39
      %p50 = scmp.ge.s32.totalorder %s49, 2
      %s51 = scalar_select %p50, 0, %s49
      %s52 = ssub.s32 %s39, %s51
      %s53 = ssub.s32 %s40, %s47
      %s54 = sor.u32 %s52, %s53
      %p55 = scmp.eq.s32.totalorder %s54, 0
      %s57 = sadd.s32 %s56, 1
      %s58 = scalar_select %p55, %s56, %s57
      %p61 = pneg %p55
      %p62 = scmp.eq.s32.totalorder %s32, 1
      %p63 = por %p61, %p62
      %p64 = scmp.ne.s32.totalorder %s56, %s59
      %p65 = scmp.eq.s32.totalorder %s32, 0
      %p66 = por %p64, %p65
      %p67 = scmp.ne.s32.totalorder %s56, %s59
      %p68 = scmp.eq.s32.totalorder %s37, 1
      %p69 = por %p67, %p68
      %p70 = scmp.ne.s32.totalorder %s59, %s60
      %p71 = scmp.eq.s32.totalorder %s37, 0
      %p72 = por %p70, %p71
      %p73 = scmp.ne.s32.totalorder %s59, %s60
      %p74 = scmp.eq.s32.totalorder %s38, 1
      %p75 = por %p73, %p74
      %p77 = scmp.ne.s32.totalorder %s60, %s76
      %p78 = scmp.eq.s32.totalorder %s38, 0
      %p79 = por %p77, %p78
      %s80 = ssub.s32 %s39, %s51
      %p81 = scmp.eq.s32.totalorder %s80, 0
      %s83 = sadd.s32 %s82, 1
      %s84 = scalar_select %p81, %s82, %s83
      %p87 = pneg %p81
      %p88 = scmp.eq.s32.totalorder %s32, 1
      %p89 = por %p87, %p88
      %p90 = scmp.ne.s32.totalorder %s82, %s85
      %p91 = scmp.eq.s32.totalorder %s32, 0
      %p92 = por %p90, %p91
      %p93 = scmp.ne.s32.totalorder %s82, %s85
      %p94 = scmp.eq.s32.totalorder %s37, 1
      %p95 = por %p93, %p94
      %p96 = scmp.ne.s32.totalorder %s85, %s86
      %p97 = scmp.eq.s32.totalorder %s37, 0
      %p98 = por %p96, %p97
      %p99 = scmp.ne.s32.totalorder %s85, %s86
      %p100 = scmp.eq.s32.totalorder %s38, 1
      %p101 = por %p99, %p100
      %p103 = scmp.ne.s32.totalorder %s86, %s102
      %p104 = scmp.eq.s32.totalorder %s38, 0
      %p105 = por %p103, %p104
      %s106 = ssub.s32 %s39, %s51
      %s107 = ssub.s32 %s40, %s47
      %s108 = sor.u32 %s106, %s107
      %p109 = scmp.eq.s32.totalorder %s108, 0
      %s111 = sadd.s32 %s110, 1
      %s112 = scalar_select %p109, %s110, %s111
      %p115 = pneg %p109
      %p116 = scmp.eq.s32.totalorder %s32, 1
      %p117 = por %p115, %p116
      %p118 = scmp.ne.s32.totalorder %s110, %s113
      %p119 = scmp.eq.s32.totalorder %s32, 0
      %p120 = por %p118, %p119
      %p121 = scmp.ne.s32.totalorder %s110, %s113
      %p122 = scmp.eq.s32.totalorder %s37, 1
      %p123 = por %p121, %p122
      %p124 = scmp.ne.s32.totalorder %s113, %s114
      %p125 = scmp.eq.s32.totalorder %s37, 0
      %p126 = por %p124, %p125
      %p127 = scmp.ne.s32.totalorder %s113, %s114
      %p128 = scmp.eq.s32.totalorder %s38, 1
      %p129 = por %p127, %p128
      %p131 = scmp.ne.s32.totalorder %s114, %s130
      %p132 = scmp.eq.s32.totalorder %s38, 0
      %p133 = por %p131, %p132
      %s135 = sadd.s32 %s134, 1
      %p138 = scmp.eq.s32.totalorder %s32, 1
      %p139 = scmp.ne.s32.totalorder %s134, %s136
      %p140 = scmp.eq.s32.totalorder %s32, 0
      %p141 = por %p139, %p140
      %p142 = scmp.ne.s32.totalorder %s134, %s136
      %p143 = scmp.eq.s32.totalorder %s37, 1
      %p144 = por %p142, %p143
      %p145 = scmp.ne.s32.totalorder %s136, %s137
      %p146 = scmp.eq.s32.totalorder %s37, 0
      %p147 = por %p145, %p146
      %p148 = scmp.ne.s32.totalorder %s136, %s137
      %p149 = scmp.eq.s32.totalorder %s38, 1
      %p150 = por %p148, %p149
      %p152 = scmp.ne.s32.totalorder %s137, %s151
      %p153 = scmp.eq.s32.totalorder %s38, 0
      %p154 = por %p152, %p153
      %s156 = sadd.s32 %s155, 1
      %p159 = scmp.eq.s32.totalorder %s32, 1
      %p160 = scmp.ne.s32.totalorder %s155, %s157
      %p161 = scmp.eq.s32.totalorder %s32, 0
      %p162 = por %p160, %p161
      %p163 = scmp.ne.s32.totalorder %s155, %s157
      %p164 = scmp.eq.s32.totalorder %s37, 1
      %p165 = por %p163, %p164
      %p166 = scmp.ne.s32.totalorder %s157, %s158
      %p167 = scmp.eq.s32.totalorder %s37, 0
      %p168 = por %p166, %p167
      %p169 = scmp.ne.s32.totalorder %s157, %s158
      %p170 = scmp.eq.s32.totalorder %s38, 1
      %p171 = por %p169, %p170
      %p173 = scmp.ne.s32.totalorder %s158, %s172
      %p174 = scmp.eq.s32.totalorder %s38, 0
      %p175 = por %p173, %p174
      %s177 = sadd.s32 %s176, 1
      %p180 = scmp.eq.s32.totalorder %s32, 1
      %p181 = scmp.ne.s32.totalorder %s176, %s178
      %p182 = scmp.eq.s32.totalorder %s32, 0
      %p183 = por %p181, %p182
      %p184 = scmp.ne.s32.totalorder %s176, %s178
      %p185 = scmp.eq.s32.totalorder %s37, 1
      %p186 = por %p184, %p185
      %p187 = scmp.ne.s32.totalorder %s178, %s179
      %p188 = scmp.eq.s32.totalorder %s37, 0
      %p189 = por %p187, %p188
      %p190 = scmp.ne.s32.totalorder %s178, %s179
      %p191 = scmp.eq.s32.totalorder %s38, 1
      %p192 = por %p190, %p191
      %p194 = scmp.ne.s32.totalorder %s179, %s193
      %p195 = scmp.eq.s32.totalorder %s38, 0
      %p196 = por %p194, %p195
      %s198 = sadd.s32 %s197, 1
      %p201 = scmp.eq.s32.totalorder %s32, 1
      %p202 = scmp.ne.s32.totalorder %s197, %s199
      %p203 = scmp.eq.s32.totalorder %s32, 0
      %p204 = por %p202, %p203
      %p205 = scmp.ne.s32.totalorder %s197, %s199
      %p206 = scmp.eq.s32.totalorder %s37, 1
      %p207 = por %p205, %p206
      %p208 = scmp.ne.s32.totalorder %s199, %s200
      %p209 = scmp.eq.s32.totalorder %s37, 0
      %p210 = por %p208, %p209
      %p211 = scmp.ne.s32.totalorder %s199, %s200
      %p212 = scmp.eq.s32.totalorder %s38, 1
      %p213 = por %p211, %p212
      %p215 = scmp.ne.s32.totalorder %s200, %s214
      %p216 = scmp.eq.s32.totalorder %s38, 0
      %p217 = por %p215, %p216
      %s219 = sadd.s32 %s218, 1
      %p222 = scmp.eq.s32.totalorder %s32, 1
      %p223 = scmp.ne.s32.totalorder %s218, %s220
      %p224 = scmp.eq.s32.totalorder %s32, 0
      %p225 = por %p223, %p224
      %p226 = scmp.ne.s32.totalorder %s218, %s220
      %p227 = scmp.eq.s32.totalorder %s37, 1
      %p228 = por %p226, %p227
      %p229 = scmp.ne.s32.totalorder %s220, %s221
      %p230 = scmp.eq.s32.totalorder %s37, 0
      %p231 = por %p229, %p230
      %p232 = scmp.ne.s32.totalorder %s220, %s221
      %p233 = scmp.eq.s32.totalorder %s38, 1
      %p234 = por %p232, %p233
      %p236 = scmp.ne.s32.totalorder %s221, %s235
      %p237 = scmp.eq.s32.totalorder %s38, 0
      %p238 = por %p236, %p237
      %s240 = sadd.s32 %s239, 1
      %p243 = scmp.eq.s32.totalorder %s32, 1
      %p244 = scmp.ne.s32.totalorder %s239, %s241
      %p245 = scmp.eq.s32.totalorder %s32, 0
      %p246 = por %p244, %p245
      %p247 = scmp.ne.s32.totalorder %s239, %s241
      %p248 = scmp.eq.s32.totalorder %s37, 1
      %p249 = por %p247, %p248
      %p250 = scmp.ne.s32.totalorder %s241, %s242
      %p251 = scmp.eq.s32.totalorder %s37, 0
      %p252 = por %p250, %p251
      %p253 = scmp.ne.s32.totalorder %s241, %s242
      %p254 = scmp.eq.s32.totalorder %s38, 1
      %p255 = por %p253, %p254
      %p257 = scmp.ne.s32.totalorder %s242, %s256
      %p258 = scmp.eq.s32.totalorder %s38, 0
      %p259 = por %p257, %p258
      %s261 = sadd.s32 %s260, 1
      %p264 = scmp.eq.s32.totalorder %s32, 1
      %p265 = scmp.ne.s32.totalorder %s260, %s262
      %p266 = scmp.eq.s32.totalorder %s32, 0
      %p267 = por %p265, %p266
      %p268 = scmp.ne.s32.totalorder %s260, %s262
      %p269 = scmp.eq.s32.totalorder %s37, 1
      %p270 = por %p268, %p269
      %p271 = scmp.ne.s32.totalorder %s262, %s263
      %p272 = scmp.eq.s32.totalorder %s37, 0
      %p273 = por %p271, %p272
      %p274 = scmp.ne.s32.totalorder %s262, %s263
      %p275 = scmp.eq.s32.totalorder %s38, 1
      %p276 = por %p274, %p275
      %p278 = scmp.ne.s32.totalorder %s263, %s277
      %p279 = scmp.eq.s32.totalorder %s38, 0
      %p280 = por %p278, %p279
      %s282 = sadd.s32 %s281, 1
      %p285 = scmp.eq.s32.totalorder %s32, 1
      %p286 = scmp.ne.s32.totalorder %s281, %s283
      %p287 = scmp.eq.s32.totalorder %s32, 0
      %p288 = por %p286, %p287
      %p289 = scmp.ne.s32.totalorder %s281, %s283
      %p290 = scmp.eq.s32.totalorder %s37, 1
      %p291 = por %p289, %p290
      %p292 = scmp.ne.s32.totalorder %s283, %s284
      %p293 = scmp.eq.s32.totalorder %s37, 0
      %p294 = por %p292, %p293
      %p295 = scmp.ne.s32.totalorder %s283, %s284
      %p296 = scmp.eq.s32.totalorder %s38, 1
      %p297 = por %p295, %p296
      %p299 = scmp.ne.s32.totalorder %s284, %s298
      %p300 = scmp.eq.s32.totalorder %s38, 0
      %p301 = por %p299, %p300
      %s302 = ssub.s32 %s39, %s51
      %s303 = ssub.s32 %s40, %s47
      %s304 = sor.u32 %s302, %s303
      %p305 = scmp.eq.s32.totalorder %s304, 0
      %s307 = sadd.s32 %s306, 1
      %s308 = scalar_select %p305, %s306, %s307
      %p311 = pneg %p305
      %p312 = scmp.eq.s32.totalorder %s32, 1
      %p313 = por %p311, %p312
      %p314 = scmp.ne.s32.totalorder %s306, %s309
      %p315 = scmp.eq.s32.totalorder %s32, 0
      %p316 = por %p314, %p315
      %p317 = scmp.ne.s32.totalorder %s306, %s309
      %p318 = scmp.eq.s32.totalorder %s37, 1
      %p319 = por %p317, %p318
      %p320 = scmp.ne.s32.totalorder %s309, %s310
      %p321 = scmp.eq.s32.totalorder %s37, 0
      %p322 = por %p320, %p321
      %p323 = scmp.ne.s32.totalorder %s309, %s310
      %p324 = scmp.eq.s32.totalorder %s38, 1
      %p325 = por %p323, %p324
      %p327 = scmp.ne.s32.totalorder %s310, %s326
      %p328 = scmp.eq.s32.totalorder %s38, 0
      %p329 = por %p327, %p328
      %s330 = ssub.s32 %s39, %s51
      %s331 = ssub.s32 %s40, %s47
      %s332 = sor.u32 %s330, %s331
      %p333 = scmp.eq.s32.totalorder %s332, 0
      %s335 = sadd.s32 %s334, 1
      %s336 = scalar_select %p333, %s334, %s335
      %p339 = pneg %p333
      %p340 = scmp.eq.s32.totalorder %s32, 1
      %p341 = por %p339, %p340
      %p342 = scmp.ne.s32.totalorder %s334, %s337
      %p343 = scmp.eq.s32.totalorder %s32, 0
      %p344 = por %p342, %p343
      %p345 = scmp.ne.s32.totalorder %s334, %s337
      %p346 = scmp.eq.s32.totalorder %s37, 1
      %p347 = por %p345, %p346
      %p348 = scmp.ne.s32.totalorder %s337, %s338
      %p349 = scmp.eq.s32.totalorder %s37, 0
      %p350 = por %p348, %p349
      %p351 = scmp.ne.s32.totalorder %s337, %s338
      %p352 = scmp.eq.s32.totalorder %s38, 1
      %p353 = por %p351, %p352
      %p355 = scmp.ne.s32.totalorder %s338, %s354
      %p356 = scmp.eq.s32.totalorder %s38, 0
      %p357 = por %p355, %p356
      %p358 = scmp.le.s32.totalorder 1, %s32
      %p359 = scmp.lt.s32.totalorder %s32, 3
      %p360 = pnand %p358, %p359
      %p361 = pneg %p360
      // Predicated region
      $region9: #{tpu_custom_call.1} parent=5 // pred_check
        _
      $region10: #{tpu_custom_call.1} parent=5 // pred_check_branch
        %363 = sbr.rel (%p360) target = $region12
      $region11: #{tpu_custom_call.1} parent=5 // pred_region
        %s364 = ssub.s32 %s32, 1
        // Predicated region
        $region13: #{tpu_custom_call.1} parent=11 // pred_check
          %p365 = pneg %p147
        $region14: #{tpu_custom_call.1} parent=11 // pred_check_branch
          %367 = sbr.rel (%p365) target = $region16
        $region15: #{tpu_custom_call.1} parent=11 // pred_region
          %s369 = ssub.s32 256, 256
          %370 = vsyncadd [#allocation7], %s369
          %s371 = sshll.u32 [#allocation6], 4
          %s372 = int_to_ptr.vmem [resolvable:$true] %s371
          %377 = dma.hbm_to_vmem [thread:$0]  %s3, 256, %s372, [#allocation7], 64, 64, 4
        $region16: #{tpu_custom_call.1} parent=11 // pred_fallthru
          _
        // Predicated region
        $region17: #{tpu_custom_call.1} parent=11 // pred_check
          %p378 = pneg %p168
        $region18: #{tpu_custom_call.1} parent=11 // pred_check_branch
          %380 = sbr.rel (%p378) target = $region20
        $region19: #{tpu_custom_call.1} parent=11 // pred_region
          %s382 = ssub.s32 256, 256
          %383 = vsyncadd [#allocation7], %s382
          %s384 = sshll.u32 [#allocation8], 4
          %s385 = int_to_ptr.vmem [resolvable:$true] %s384
          %390 = dma.hbm_to_vmem [thread:$0]  %s4, 256, %s385, [#allocation7], 64, 64, 4
        $region20: #{tpu_custom_call.1} parent=11 // pred_fallthru
          _
        // Predicated region
        $region21: #{tpu_custom_call.1} parent=11 // pred_check
          %p391 = pneg %p189
        $region22: #{tpu_custom_call.1} parent=11 // pred_check_branch
          %393 = sbr.rel (%p391) target = $region24
        $region23: #{tpu_custom_call.1} parent=11 // pred_region
          %s395 = ssub.s32 16, 16
          %396 = vsyncadd [#allocation10], %s395
          %s398 = sshll.u32 [#allocation9], 4
          %s399 = int_to_ptr.vmem [resolvable:$true] %s398
          %401 = dma.hbm_to_vmem [thread:$0]  %s5, 16, %s399, [#allocation10]
        $region24: #{tpu_custom_call.1} parent=11 // pred_fallthru
          _
        // Predicated region
        $region25: #{tpu_custom_call.1} parent=11 // pred_check
          %p402 = pneg %p210
        $region26: #{tpu_custom_call.1} parent=11 // pred_check_branch
          %404 = sbr.rel (%p402) target = $region28
        $region27: #{tpu_custom_call.1} parent=11 // pred_region
          %s406 = ssub.s32 256, 256
          %407 = vsyncadd [#allocation10], %s406
          %s408 = sshll.u32 [#allocation11], 4
          %s409 = int_to_ptr.vmem [resolvable:$true] %s408
          %414 = dma.hbm_to_vmem [thread:$0]  %s6, 256, %s409, [#allocation10], 64, 64, 4
        $region28: #{tpu_custom_call.1} parent=11 // pred_fallthru
          _
        // Predicated region
        $region29: #{tpu_custom_call.1} parent=11 // pred_check
          %p415 = pneg %p231
        $region30: #{tpu_custom_call.1} parent=11 // pred_check_branch
          %417 = sbr.rel (%p415) target = $region32
        $region31: #{tpu_custom_call.1} parent=11 // pred_region
          %s419 = ssub.s32 256, 256
          %420 = vsyncadd [#allocation13], %s419
          %s421 = sshll.u32 [#allocation12], 4
          %s422 = int_to_ptr.vmem [resolvable:$true] %s421
          %427 = dma.hbm_to_vmem [thread:$0]  %s7, 256, %s422, [#allocation13], 64, 64, 4
        $region32: #{tpu_custom_call.1} parent=11 // pred_fallthru
          _
        // Predicated region
        $region33: #{tpu_custom_call.1} parent=11 // pred_check
          %p428 = pneg %p252
        $region34: #{tpu_custom_call.1} parent=11 // pred_check_branch
          %430 = sbr.rel (%p428) target = $region36
        $region35: #{tpu_custom_call.1} parent=11 // pred_region
          %s432 = ssub.s32 16, 16
          %433 = vsyncadd [#allocation13], %s432
          %s435 = sshll.u32 [#allocation14], 4
          %s436 = int_to_ptr.vmem [resolvable:$true] %s435
          %438 = dma.hbm_to_vmem [thread:$0]  %s8, 16, %s436, [#allocation13]
        $region36: #{tpu_custom_call.1} parent=11 // pred_fallthru
          _
        // Predicated region
        $region37: #{tpu_custom_call.1} parent=11 // pred_check
          %p439 = pneg %p273
        $region38: #{tpu_custom_call.1} parent=11 // pred_check_branch
          %441 = sbr.rel (%p439) target = $region40
        $region39: #{tpu_custom_call.1} parent=11 // pred_region
          _
        $region40: #{tpu_custom_call.1} parent=11 // pred_fallthru
          _
        // Predicated region
        $region41: #{tpu_custom_call.1} parent=11 // pred_check
          %p442 = pneg %p294
        $region42: #{tpu_custom_call.1} parent=11 // pred_check_branch
          %444 = sbr.rel (%p442) target = $region44
        $region43: #{tpu_custom_call.1} parent=11 // pred_region
          %s446 = ssub.s32 128, 128
          %447 = vsyncadd [#allocation16], %s446
          %s449 = sshll.u32 [#allocation15], 4
          %s450 = int_to_ptr.vmem [resolvable:$true] %s449
          %452 = dma.hbm_to_vmem [thread:$0]  %s10, 128, %s450, [#allocation16]
        $region44: #{tpu_custom_call.1} parent=11 // pred_fallthru
          _
      $region12: #{tpu_custom_call.1} parent=5 // pred_fallthru
        _
      %p453 = scmp.lt.s32.totalorder %s32, 2
      // Predicated region
      $region45: #{tpu_custom_call.1} parent=5 // pred_check
        %p454 = pneg %p453
      $region46: #{tpu_custom_call.1} parent=5 // pred_check_branch
        %456 = sbr.rel (%p454) target = $region48
      $region47: #{tpu_custom_call.1} parent=5 // pred_region
        // Predicated region
        $region49: #{tpu_custom_call.1} parent=47 // pred_check
          %p457 = pneg %p66
        $region50: #{tpu_custom_call.1} parent=47 // pred_check_branch
          %459 = sbr.rel (%p457) target = $region52
        $region51: #{tpu_custom_call.1} parent=47 // pred_region
          %p460 = scmp.lt.s32.totalorder %s39, 1
          %s461 = scalar_select %p460, %s39, 1
          %p462 = scmp.lt.s32.totalorder %s40, 0
          %s463 = scalar_select %p462, %s40, 0
          %s464 = sadd.s32 %s463, %s461
          %s465 = smul.addr %s464, 8
          %s466 = scalar_lea.vmem %s0, %s465
        $region52: #{tpu_custom_call.1} parent=47 // pred_fallthru
          _
        // Predicated region
        $region53: #{tpu_custom_call.1} parent=47 // pred_check
          %p467 = pneg %p92
        $region54: #{tpu_custom_call.1} parent=47 // pred_check_branch
          %469 = sbr.rel (%p467) target = $region56
        $region55: #{tpu_custom_call.1} parent=47 // pred_region
          %s470 = sand.u32 %s82, 1
          %s471 = scalar_lea.sflag [#allocation4], %s470
          %s472 = sand.u32 %s82, 1
          %s473 = smul.addr %s472, 4
          %s474 = scalar_lea.vmem [#allocation3], %s473
          %s476 = ssub.s32 64, 64
          %477 = vsyncadd %s471, %s476
          %s478 = smul.addr %s39, 64
          %s479 = scalar_lea.hbm %s1, %s478
          %s481 = sshll.u32 %s474, 4
          %s482 = int_to_ptr.vmem [resolvable:$true] %s481
          %484 = dma.hbm_to_vmem [thread:$0]  %s479, 64, %s482, %s471
        $region56: #{tpu_custom_call.1} parent=47 // pred_fallthru
          _
        // Predicated region
        $region57: #{tpu_custom_call.1} parent=47 // pred_check
          %p485 = pneg %p120
        $region58: #{tpu_custom_call.1} parent=47 // pred_check_branch
          %487 = sbr.rel (%p485) target = $region60
        $region59: #{tpu_custom_call.1} parent=47 // pred_region
          %s488 = smul.u32 4, %s39
          %p489 = scmp.lt.s32.totalorder %s488, 7
          %s490 = scalar_select %p489, %s488, 7
          %p491 = scmp.lt.s32.totalorder %s40, 0
          %s492 = scalar_select %p491, %s40, 0
          %s493 = sadd.s32 %s492, %s490
          %s494 = smul.addr %s493, 4
          %s495 = scalar_lea.vmem %s2, %s494
          %s496 = smul.u32 4, %s39
        $region60: #{tpu_custom_call.1} parent=47 // pred_fallthru
          _
      $region48: #{tpu_custom_call.1} parent=5 // pred_fallthru
        _
      %p497 = scmp.le.s32.totalorder 1, %s32
      %p498 = scmp.lt.s32.totalorder %s32, 3
      %p499 = pnand %p497, %p498
      %p500 = pneg %p499
      // Predicated region
      $region61: #{tpu_custom_call.1} parent=5 // pred_check
        _
      $region62: #{tpu_custom_call.1} parent=5 // pred_check_branch
        %502 = sbr.rel (%p499) target = $region64
      $region63: #{tpu_custom_call.1} parent=5 // pred_region
        %s503 = ssub.s32 %s32, 1
        %s504 = sand.u32 %s85, 1
        %s505 = scalar_lea.sflag [#allocation4], %s504
        %s506 = sand.u32 %s85, 1
        %s507 = smul.addr %s506, 4
        %s508 = scalar_lea.vmem [#allocation3], %s507
        // Predicated region
        $region65: #{tpu_custom_call.1} parent=63 // pred_check
          %p509 = pneg %p98
        $region66: #{tpu_custom_call.1} parent=63 // pred_check_branch
          %511 = sbr.rel (%p509) target = $region68
        $region67: #{tpu_custom_call.1} parent=63 // pred_region
          %512 = dma.done %s505, 64
        $region68: #{tpu_custom_call.1} parent=63 // pred_fallthru
          _
        // Predicated region
        $region69: #{tpu_custom_call.1} parent=63 // pred_check
          %p513 = pneg %p147
        $region70: #{tpu_custom_call.1} parent=63 // pred_check_branch
          %515 = sbr.rel (%p513) target = $region72
        $region71: #{tpu_custom_call.1} parent=63 // pred_region
          %516 = dma.done [#allocation7], 256
        $region72: #{tpu_custom_call.1} parent=63 // pred_fallthru
          _
        // Predicated region
        $region73: #{tpu_custom_call.1} parent=63 // pred_check
          %p517 = pneg %p168
        $region74: #{tpu_custom_call.1} parent=63 // pred_check_branch
          %519 = sbr.rel (%p517) target = $region76
        $region75: #{tpu_custom_call.1} parent=63 // pred_region
          %520 = dma.done [#allocation7], 256
        $region76: #{tpu_custom_call.1} parent=63 // pred_fallthru
          _
        // Predicated region
        $region77: #{tpu_custom_call.1} parent=63 // pred_check
          %p521 = pneg %p189
        $region78: #{tpu_custom_call.1} parent=63 // pred_check_branch
          %523 = sbr.rel (%p521) target = $region80
        $region79: #{tpu_custom_call.1} parent=63 // pred_region
          %524 = dma.done [#allocation10], 16
        $region80: #{tpu_custom_call.1} parent=63 // pred_fallthru
          _
        // Predicated region
        $region81: #{tpu_custom_call.1} parent=63 // pred_check
          %p525 = pneg %p210
        $region82: #{tpu_custom_call.1} parent=63 // pred_check_branch
          %527 = sbr.rel (%p525) target = $region84
        $region83: #{tpu_custom_call.1} parent=63 // pred_region
          %528 = dma.done [#allocation10], 256
        $region84: #{tpu_custom_call.1} parent=63 // pred_fallthru
          _
        // Predicated region
        $region85: #{tpu_custom_call.1} parent=63 // pred_check
          %p529 = pneg %p231
        $region86: #{tpu_custom_call.1} parent=63 // pred_check_branch
          %531 = sbr.rel (%p529) target = $region88
        $region87: #{tpu_custom_call.1} parent=63 // pred_region
          %532 = dma.done [#allocation13], 256
        $region88: #{tpu_custom_call.1} parent=63 // pred_fallthru
          _
        // Predicated region
        $region89: #{tpu_custom_call.1} parent=63 // pred_check
          %p533 = pneg %p252
        $region90: #{tpu_custom_call.1} parent=63 // pred_check_branch
          %535 = sbr.rel (%p533) target = $region92
        $region91: #{tpu_custom_call.1} parent=63 // pred_region
          %536 = dma.done [#allocation13], 16
        $region92: #{tpu_custom_call.1} parent=63 // pred_fallthru
          _
        // Predicated region
        $region93: #{tpu_custom_call.1} parent=63 // pred_check
          %p537 = pneg %p294
        $region94: #{tpu_custom_call.1} parent=63 // pred_check_branch
          %539 = sbr.rel (%p537) target = $region96
        $region95: #{tpu_custom_call.1} parent=63 // pred_region
          %540 = dma.done [#allocation16], 128
        $region96: #{tpu_custom_call.1} parent=63 // pred_fallthru
          _
        %p541 = scmp.lt.s32.totalorder %s41, 1
        %s542 = scalar_select %p541, %s41, 1
        %p543 = scmp.lt.s32.totalorder %s42, 0
        %s544 = scalar_select %p543, %s42, 0
        %s545 = sadd.s32 %s544, %s542
        %s546 = smul.addr %s545, 8
        %s547 = scalar_lea.vmem %s0, %s546
        %p548 = pneg %p72
        %p549 = pneg %p69
        %s550 = sand.u32 %s85, 1
        %s551 = scalar_lea.sflag [#allocation4], %s550
        %s552 = sand.u32 %s85, 1
        %s553 = smul.addr %s552, 4
        %s554 = scalar_lea.vmem [#allocation3], %s553
        %p555 = pneg %p98
        %p556 = pneg %p95
        %s557 = smul.u32 4, %s41
        %p558 = scmp.lt.s32.totalorder %s557, 7
        %s559 = scalar_select %p558, %s557, 7
        %p560 = scmp.lt.s32.totalorder %s42, 0
        %s561 = scalar_select %p560, %s42, 0
        %s562 = sadd.s32 %s561, %s559
        %s563 = smul.addr %s562, 4
        %s564 = scalar_lea.vmem %s2, %s563
        %p565 = pneg %p126
        %p566 = pneg %p123
        %p567 = pneg %p147
        %p568 = pneg %p144
        %p569 = pneg %p168
        %p570 = pneg %p165
        %p571 = pneg %p189
        %p572 = pneg %p186
        %p573 = pneg %p210
        %p574 = pneg %p207
        %p575 = pneg %p231
        %p576 = pneg %p228
        %p577 = pneg %p252
        %p578 = pneg %p249
        %p579 = pneg %p273
        %p580 = pneg %p270
        %p581 = pneg %p294
        %p582 = pneg %p291
        %p583 = pneg %p322
        %p584 = pneg %p319
        %s585 = sand.u32 %s309, 1
        %s586 = scalar_lea.sflag [#allocation5], %s585
        %s587 = sand.u32 %s309, 1
        %s588 = smul.addr %s587, 8
        %s589 = scalar_lea.vmem [#allocation17], %s588
        %p590 = pneg %p350
        %p591 = pneg %p347
        %s592 = sand.u32 %s337, 1
        %s593 = scalar_lea.sflag [#allocation19], %s592
        %s594 = sand.u32 %s337, 1
        %s595 = smul.addr %s594, 4
        %s596 = scalar_lea.vmem [#allocation18], %s595
        %p597 = scmp.lt.s32.totalorder %s41, 1
        %s598 = scalar_select %p597, %s41, 1
        %p599 = scmp.lt.s32.totalorder %s42, 0
        %s600 = scalar_select %p599, %s42, 0
        %s601 = sadd.s32 %s600, %s598
        %s602 = smul.addr %s601, 8
        %s603 = scalar_lea.vmem %s0, %s602
        %s604 = smul.u32 4, %s41
        %p605 = scmp.lt.s32.totalorder %s604, 7
        %s606 = scalar_select %p605, %s604, 7
        %p607 = scmp.lt.s32.totalorder %s42, 0
        %s608 = scalar_select %p607, %s42, 0
        %s609 = sadd.s32 %s608, %s606
        %s610 = smul.addr %s609, 4
        %s611 = scalar_lea.vmem %s2, %s610
        %s612 = smul.u32 4, %s41
        %p614 = scmp.eq.s32.totalorder %s42, 0
        // Predicated region
        $region97: #{tpu_custom_call.1} parent=63 // pred_check
          %p615 = pneg %p614
        $region98: #{tpu_custom_call.1} parent=63 // pred_check_branch
          %617 = sbr.rel (%p615) target = $region100
        $region99: #{tpu_custom_call.1} parent=63 // pred_region
          %v618 = vld [vmem:[%s508] sm:$0xf]
          %v619 = vld [vmem:[#allocation8] sm:$0xf]
          %v620 = vld [vmem:[#allocation8 + $0x4] sm:$0xf]
          %v621 = vld [vmem:[#allocation8 + $0x8] sm:$0xf]
          %v622 = vld [vmem:[#allocation8 + $0xc] sm:$0xf]
          %v623 = vld [vmem:[#allocation9] sm:$0x1]
          %v625 = vlaneseq
          %v626 = vshrl.u32 %v625, 7
          %v627 = vsub.s32 0, %v626
          %v628 = vrot.slane %v623, %v627
          %v634 = vunpack.c.l.b16 %v619
          %v635 = vunpack.c.l.b16 %v620
          %v636 = vunpack.c.l.b16 %v621
          %v637 = vunpack.c.l.b16 %v622
          %v638 = vpack.c.b16 %v635, %v634
          %v639 = vpack.c.b16 %v637, %v636
          %vm642 = vcmask 261120
          %v644 = vsel %vm642, %v618, 0
          %646 = vmatprep.subr.bf16.mxu0 0
          %647 = vmatpush1.bf16.msra.mxu0 0
          %648 = vmatprep.subr.bf16.mxu0 0
          %649 = vmatpush1.bf16.msra.mxu0 0
          %650 = vmatprep.subr.bf16.mxu0 0
          %651 = vmatpush1.bf16.msra.mxu0 0
          %652 = vmatprep.subr.bf16.mxu0 0
          %653 = vmatpush1.bf16.msra.mxu0 0
          %654 = vmatprep.subr.bf16.mxu0 0
          %655 = vmatpush1.bf16.msra.mxu0 0
          %656 = vmatprep.subr.bf16.mxu0 0
          %657 = vmatpush1.bf16.msra.mxu0 0
          %658 = vmatprep.subr.bf16.mxu0 0
          %659 = vmatpush1.bf16.msra.mxu0 %v639
          %660 = vmatprep.subr.bf16.mxu0 0
          %661 = vmatpush1.bf16.msra.mxu0 %v638
          %662 = vmatprep.subr.bf16.mxu0 0
          %663 = vmatpush2.bf16.msra.mxu0 0
          %664 = vmatprep.subr.bf16.mxu0 0
          %665 = vmatpush2.bf16.msra.mxu0 0
          %666 = vmatprep.subr.bf16.mxu0 0
          %667 = vmatpush2.bf16.msra.mxu0 0
          %668 = vmatprep.subr.bf16.mxu0 0
          %669 = vmatpush2.bf16.msra.mxu0 0
          %670 = vmatprep.subr.bf16.mxu0 0
          %671 = vmatpush2.bf16.msra.mxu0 0
          %672 = vmatprep.subr.bf16.mxu0 0
          %673 = vmatpush2.bf16.msra.mxu0 0
          %674 = vmatprep.subr.bf16.mxu0 0
          %675 = vmatpush2.bf16.msra.mxu0 0
          %676 = vmatprep.subr.bf16.mxu0 0
          %677 = vmatpush2.bf16.msra.mxu0 0
          %678 = vmatprep.mubr.bf16.mxu0 0
          %679 = vmatmul.mubr.bf16.gmra.mxu0 %v644
          %v680 = vpop.f32.mrf.mxu0
          %v681 = vadd.f32 %v628, %v680
          %v682 = vpop.f32.mrf.mxu0
          %v683 = vpop.f32.mrf.mxu0
          %v684 = vpop.f32.mrf.mxu0
          %685 = vdwg.mxu0
          %v686 = vpack.c.bf16 %v681, %v681
          %vm687 = vcmask 60416
          %688 = vst.msk [vmem:[#allocation2] sm:$0xf] %vm687, %v686
          %v690 = vunpack.c.l.b16 %v686
          %v691 = vpack.c.b16 %v690, %v690
          %692 = vrot.lane.b32.xlu0 %v691, 96
          %v693 = vpop.permute.xlu0 %692
          %s695 = scalar_lea.vmem [#allocation2], 16
          %696 = vst.msk [vmem:[%s695] sm:$0xf] %vm687, %v693
          %697 = vrot.lane.b32.xlu0 %v691, 120
          %v698 = vpop.permute.xlu0 %697
          %s700 = scalar_lea.vmem [#allocation2], 4
          %701 = vst.msk [vmem:[%s700] sm:$0xf] %vm687, %v698
          %702 = vrot.lane.b32.xlu0 %v691, 88
          %v703 = vpop.permute.xlu0 %702
          %s705 = scalar_lea.vmem [#allocation2], 20
          %706 = vst.msk [vmem:[%s705] sm:$0xf] %vm687, %v703
          %707 = vrot.lane.b32.xlu0 %v691, 112
          %v708 = vpop.permute.xlu0 %707
          %s710 = scalar_lea.vmem [#allocation2], 8
          %711 = vst.msk [vmem:[%s710] sm:$0xf] %vm687, %v708
          %712 = vrot.lane.b32.xlu0 %v691, 80
          %v713 = vpop.permute.xlu0 %712
          %s715 = scalar_lea.vmem [#allocation2], 24
          %716 = vst.msk [vmem:[%s715] sm:$0xf] %vm687, %v713
          %717 = vrot.lane.b32.xlu0 %v691, 104
          %v718 = vpop.permute.xlu0 %717
          %s720 = scalar_lea.vmem [#allocation2], 12
          %721 = vst.msk [vmem:[%s720] sm:$0xf] %vm687, %v718
          %722 = vrot.lane.b32.xlu0 %v691, 72
          %v723 = vpop.permute.xlu0 %722
          %s725 = scalar_lea.vmem [#allocation2], 28
          %726 = vst.msk [vmem:[%s725] sm:$0xf] %vm687, %v723
        $region100: #{tpu_custom_call.1} parent=63 // pred_fallthru
          _
        %v727 = vld [vmem:[#allocation15] sm:$0xff]
        %v728 = vld [vmem:[%s603] sm:$0xff]
        %v729 = vpack.c.bf16 %v728, %v728
        %v730 = vld [vmem:[#allocation6] sm:$0xf]
        %v731 = vld [vmem:[#allocation6 + $0x4] sm:$0xf]
        %v732 = vld [vmem:[#allocation6 + $0x8] sm:$0xf]
        %v733 = vld [vmem:[#allocation6 + $0xc] sm:$0xf]
        %v734 = vlaneseq
        %v735 = vshrl.u32 %v734, 7
        %v736 = vsub.s32 0, %v735
        %v737 = vrot.slane %v727, %v736
        %v742 = vunpack.c.l.b16 %v730
        %v743 = vunpack.c.l.b16 %v731
        %v744 = vunpack.c.l.b16 %v732
        %v745 = vunpack.c.l.b16 %v733
        %v746 = vpack.c.b16 %v743, %v742
        %v747 = vpack.c.b16 %v745, %v744
        %vm750 = vcmask 261120
        %v752 = vsel %vm750, %v729, 0
        %754 = vmatprep.subr.bf16.mxu0 0
        %755 = vmatpush1.bf16.msra.mxu0 0
        %756 = vmatprep.subr.bf16.mxu0 0
        %757 = vmatpush1.bf16.msra.mxu0 0
        %758 = vmatprep.subr.bf16.mxu0 0
        %759 = vmatpush1.bf16.msra.mxu0 0
        %760 = vmatprep.subr.bf16.mxu0 0
        %761 = vmatpush1.bf16.msra.mxu0 0
        %762 = vmatprep.subr.bf16.mxu0 0
        %763 = vmatpush1.bf16.msra.mxu0 0
        %764 = vmatprep.subr.bf16.mxu0 0
        %765 = vmatpush1.bf16.msra.mxu0 0
        %766 = vmatprep.subr.bf16.mxu0 0
        %767 = vmatpush1.bf16.msra.mxu0 %v747
        %768 = vmatprep.subr.bf16.mxu0 0
        %769 = vmatpush1.bf16.msra.mxu0 %v746
        %770 = vmatprep.subr.bf16.mxu0 0
        %771 = vmatpush2.bf16.msra.mxu0 0
        %772 = vmatprep.subr.bf16.mxu0 0
        %773 = vmatpush2.bf16.msra.mxu0 0
        %774 = vmatprep.subr.bf16.mxu0 0
        %775 = vmatpush2.bf16.msra.mxu0 0
        %776 = vmatprep.subr.bf16.mxu0 0
        %777 = vmatpush2.bf16.msra.mxu0 0
        %778 = vmatprep.subr.bf16.mxu0 0
        %779 = vmatpush2.bf16.msra.mxu0 0
        %780 = vmatprep.subr.bf16.mxu0 0
        %781 = vmatpush2.bf16.msra.mxu0 0
        %782 = vmatprep.subr.bf16.mxu0 0
        %783 = vmatpush2.bf16.msra.mxu0 0
        %784 = vmatprep.subr.bf16.mxu0 0
        %785 = vmatpush2.bf16.msra.mxu0 0
        %786 = vmatprep.mubr.bf16.mxu0 0
        %787 = vmatmul.mubr.bf16.gmra.mxu0 %v752
        %v788 = vpop.f32.mrf.mxu0
        %v789 = vadd.f32 %v737, %v788
        %v790 = vpop.f32.mrf.mxu0
        %v791 = vpop.f32.mrf.mxu0
        %v792 = vpop.f32.mrf.mxu0
        %793 = vdwg.mxu0
        %795 = vrot.lane.b32.xlu0 %v789, 120
        %v796 = vpop.permute.xlu0 %795
        %798 = vrot.lane.b32.xlu0 %v789, 112
        %v799 = vpop.permute.xlu0 %798
        %801 = vrot.lane.b32.xlu0 %v789, 104
        %v802 = vpop.permute.xlu0 %801
        %v804 = vpack.c.bf16 %v789, %v789
        %v805 = vpack.c.bf16 %v796, %v796
        %v806 = vpack.c.bf16 %v799, %v799
        %v807 = vpack.c.bf16 %v802, %v802
        %v808 = vld [vmem:[#allocation2] sm:$0xf]
        %v809 = vld [vmem:[#allocation2 + $0x4] sm:$0xf]
        %v810 = vld [vmem:[#allocation2 + $0x8] sm:$0xf]
        %v811 = vld [vmem:[#allocation2 + $0xc] sm:$0xf]
        %s812 = scalar_lea.vmem [#allocation2], 16
        %v813 = vld [vmem:[%s812] sm:$0xf]
        %v814 = vld [vmem:[%s812 + $0x4] sm:$0xf]
        %v815 = vld [vmem:[%s812 + $0x8] sm:$0xf]
        %v816 = vld [vmem:[%s812 + $0xc] sm:$0xf]
        %v817 = vld [vmem:[%s611] sm:$0xf]
        %v818 = vld [vmem:[%s611 + $0x4] sm:$0xf]
        %v819 = vld [vmem:[%s611 + $0x8] sm:$0xf]
        %v820 = vld [vmem:[%s611 + $0xc] sm:$0xf]
        %v821 = vunpack.c.l.bf16 %v817
        %v822 = vunpack.c.l.bf16 %v818
        %v823 = vunpack.c.l.bf16 %v819
        %v824 = vunpack.c.l.bf16 %v820
        %vm825 = vcmask 64512
        %v827 = vsel %vm825, %v804, 0
        %v830 = vsel %vm825, %v808, 0
        %832 = vmatprep.subr.bf16.mxu0 0
        %833 = vmatpush1.bf16.xpose.msra.mxu0 0
        %834 = vmatprep.subr.bf16.mxu0 0
        %835 = vmatpush1.bf16.xpose.msra.mxu0 0
        %836 = vmatprep.subr.bf16.mxu0 0
        %837 = vmatpush1.bf16.xpose.msra.mxu0 0
        %838 = vmatprep.subr.bf16.mxu0 0
        %839 = vmatpush1.bf16.xpose.msra.mxu0 0
        %840 = vmatprep.subr.bf16.mxu0 0
        %841 = vmatpush1.bf16.xpose.msra.mxu0 0
        %842 = vmatprep.subr.bf16.mxu0 0
        %843 = vmatpush1.bf16.xpose.msra.mxu0 0
        %844 = vmatprep.subr.bf16.mxu0 0
        %845 = vmatpush1.bf16.xpose.msra.mxu0 0
        %846 = vmatprep.subr.bf16.mxu0 0
        %847 = vmatpush1.bf16.xpose.msra.mxu0 %v830
        %848 = vmatprep.subr.bf16.mxu0 0
        %849 = vmatpush2.bf16.xpose.msra.mxu0 0
        %850 = vmatprep.subr.bf16.mxu0 0
        %851 = vmatpush2.bf16.xpose.msra.mxu0 0
        %852 = vmatprep.subr.bf16.mxu0 0
        %853 = vmatpush2.bf16.xpose.msra.mxu0 0
        %854 = vmatprep.subr.bf16.mxu0 0
        %855 = vmatpush2.bf16.xpose.msra.mxu0 0
        %856 = vmatprep.subr.bf16.mxu0 0
        %857 = vmatpush2.bf16.xpose.msra.mxu0 0
        %858 = vmatprep.subr.bf16.mxu0 0
        %859 = vmatpush2.bf16.xpose.msra.mxu0 0
        %860 = vmatprep.subr.bf16.mxu0 0
        %861 = vmatpush2.bf16.xpose.msra.mxu0 0
        %862 = vmatprep.subr.bf16.mxu0 0
        %863 = vmatpush2.bf16.xpose.msra.mxu0 0
        %864 = vmatprep.mubr.bf16.mxu0 0
        %865 = vmatmul.mubr.bf16.gmra.mxu0 %v827
        %v866 = vpop.f32.mrf.mxu0
        %v867 = vadd.f32 %v821, %v866
        %v868 = vpop.f32.mrf.mxu0
        %v869 = vpop.f32.mrf.mxu0
        %v870 = vpop.f32.mrf.mxu0
        %871 = vdwg.mxu0
        %v873 = vsel %vm825, %v805, 0
        %v876 = vsel %vm825, %v809, 0
        %878 = vmatprep.subr.bf16.mxu0 0
        %879 = vmatpush1.bf16.xpose.msra.mxu0 0
        %880 = vmatprep.subr.bf16.mxu0 0
        %881 = vmatpush1.bf16.xpose.msra.mxu0 0
        %882 = vmatprep.subr.bf16.mxu0 0
        %883 = vmatpush1.bf16.xpose.msra.mxu0 0
        %884 = vmatprep.subr.bf16.mxu0 0
        %885 = vmatpush1.bf16.xpose.msra.mxu0 0
        %886 = vmatprep.subr.bf16.mxu0 0
        %887 = vmatpush1.bf16.xpose.msra.mxu0 0
        %888 = vmatprep.subr.bf16.mxu0 0
        %889 = vmatpush1.bf16.xpose.msra.mxu0 0
        %890 = vmatprep.subr.bf16.mxu0 0
        %891 = vmatpush1.bf16.xpose.msra.mxu0 0
        %892 = vmatprep.subr.bf16.mxu0 0
        %893 = vmatpush1.bf16.xpose.msra.mxu0 %v876
        %894 = vmatprep.subr.bf16.mxu0 0
        %895 = vmatpush2.bf16.xpose.msra.mxu0 0
        %896 = vmatprep.subr.bf16.mxu0 0
        %897 = vmatpush2.bf16.xpose.msra.mxu0 0
        %898 = vmatprep.subr.bf16.mxu0 0
        %899 = vmatpush2.bf16.xpose.msra.mxu0 0
        %900 = vmatprep.subr.bf16.mxu0 0
        %901 = vmatpush2.bf16.xpose.msra.mxu0 0
        %902 = vmatprep.subr.bf16.mxu0 0
        %903 = vmatpush2.bf16.xpose.msra.mxu0 0
        %904 = vmatprep.subr.bf16.mxu0 0
        %905 = vmatpush2.bf16.xpose.msra.mxu0 0
        %906 = vmatprep.subr.bf16.mxu0 0
        %907 = vmatpush2.bf16.xpose.msra.mxu0 0
        %908 = vmatprep.subr.bf16.mxu0 0
        %909 = vmatpush2.bf16.xpose.msra.mxu0 0
        %910 = vmatprep.mubr.bf16.mxu0 0
        %911 = vmatmul.mubr.bf16.gmra.mxu0 %v873
        %v912 = vpop.f32.mrf.mxu0
        %v913 = vadd.f32 %v822, %v912
        %v914 = vpop.f32.mrf.mxu0
        %v915 = vpop.f32.mrf.mxu0
        %v916 = vpop.f32.mrf.mxu0
        %917 = vdwg.mxu0
        %v919 = vsel %vm825, %v806, 0
        %v922 = vsel %vm825, %v810, 0
        %924 = vmatprep.subr.bf16.mxu0 0
        %925 = vmatpush1.bf16.xpose.msra.mxu0 0
        %926 = vmatprep.subr.bf16.mxu0 0
        %927 = vmatpush1.bf16.xpose.msra.mxu0 0
        %928 = vmatprep.subr.bf16.mxu0 0
        %929 = vmatpush1.bf16.xpose.msra.mxu0 0
        %930 = vmatprep.subr.bf16.mxu0 0
        %931 = vmatpush1.bf16.xpose.msra.mxu0 0
        %932 = vmatprep.subr.bf16.mxu0 0
        %933 = vmatpush1.bf16.xpose.msra.mxu0 0
        %934 = vmatprep.subr.bf16.mxu0 0
        %935 = vmatpush1.bf16.xpose.msra.mxu0 0
        %936 = vmatprep.subr.bf16.mxu0 0
        %937 = vmatpush1.bf16.xpose.msra.mxu0 0
        %938 = vmatprep.subr.bf16.mxu0 0
        %939 = vmatpush1.bf16.xpose.msra.mxu0 %v922
        %940 = vmatprep.subr.bf16.mxu0 0
        %941 = vmatpush2.bf16.xpose.msra.mxu0 0
        %942 = vmatprep.subr.bf16.mxu0 0
        %943 = vmatpush2.bf16.xpose.msra.mxu0 0
        %944 = vmatprep.subr.bf16.mxu0 0
        %945 = vmatpush2.bf16.xpose.msra.mxu0 0
        %946 = vmatprep.subr.bf16.mxu0 0
        %947 = vmatpush2.bf16.xpose.msra.mxu0 0
        %948 = vmatprep.subr.bf16.mxu0 0
        %949 = vmatpush2.bf16.xpose.msra.mxu0 0
        %950 = vmatprep.subr.bf16.mxu0 0
        %951 = vmatpush2.bf16.xpose.msra.mxu0 0
        %952 = vmatprep.subr.bf16.mxu0 0
        %953 = vmatpush2.bf16.xpose.msra.mxu0 0
        %954 = vmatprep.subr.bf16.mxu0 0
        %955 = vmatpush2.bf16.xpose.msra.mxu0 0
        %956 = vmatprep.mubr.bf16.mxu0 0
        %957 = vmatmul.mubr.bf16.gmra.mxu0 %v919
        %v958 = vpop.f32.mrf.mxu0
        %v959 = vadd.f32 %v823, %v958
        %v960 = vpop.f32.mrf.mxu0
        %v961 = vpop.f32.mrf.mxu0
        %v962 = vpop.f32.mrf.mxu0
        %963 = vdwg.mxu0
        %v965 = vsel %vm825, %v807, 0
        %v968 = vsel %vm825, %v811, 0
        %970 = vmatprep.subr.bf16.mxu0 0
        %971 = vmatpush1.bf16.xpose.msra.mxu0 0
        %972 = vmatprep.subr.bf16.mxu0 0
        %973 = vmatpush1.bf16.xpose.msra.mxu0 0
        %974 = vmatprep.subr.bf16.mxu0 0
        %975 = vmatpush1.bf16.xpose.msra.mxu0 0
        %976 = vmatprep.subr.bf16.mxu0 0
        %977 = vmatpush1.bf16.xpose.msra.mxu0 0
        %978 = vmatprep.subr.bf16.mxu0 0
        %979 = vmatpush1.bf16.xpose.msra.mxu0 0
        %980 = vmatprep.subr.bf16.mxu0 0
        %981 = vmatpush1.bf16.xpose.msra.mxu0 0
        %982 = vmatprep.subr.bf16.mxu0 0
        %983 = vmatpush1.bf16.xpose.msra.mxu0 0
        %984 = vmatprep.subr.bf16.mxu0 0
        %985 = vmatpush1.bf16.xpose.msra.mxu0 %v968
        %986 = vmatprep.subr.bf16.mxu0 0
        %987 = vmatpush2.bf16.xpose.msra.mxu0 0
        %988 = vmatprep.subr.bf16.mxu0 0
        %989 = vmatpush2.bf16.xpose.msra.mxu0 0
        %990 = vmatprep.subr.bf16.mxu0 0
        %991 = vmatpush2.bf16.xpose.msra.mxu0 0
        %992 = vmatprep.subr.bf16.mxu0 0
        %993 = vmatpush2.bf16.xpose.msra.mxu0 0
        %994 = vmatprep.subr.bf16.mxu0 0
        %995 = vmatpush2.bf16.xpose.msra.mxu0 0
        %996 = vmatprep.subr.bf16.mxu0 0
        %997 = vmatpush2.bf16.xpose.msra.mxu0 0
        %998 = vmatprep.subr.bf16.mxu0 0
        %999 = vmatpush2.bf16.xpose.msra.mxu0 0
        %1000 = vmatprep.subr.bf16.mxu0 0
        %1001 = vmatpush2.bf16.xpose.msra.mxu0 0
        %1002 = vmatprep.mubr.bf16.mxu0 0
        %1003 = vmatmul.mubr.bf16.gmra.mxu0 %v965
        %v1004 = vpop.f32.mrf.mxu0
        %v1005 = vadd.f32 %v824, %v1004
        %v1006 = vpop.f32.mrf.mxu0
        %v1007 = vpop.f32.mrf.mxu0
        %v1008 = vpop.f32.mrf.mxu0
        %1009 = vdwg.mxu0
        %v1010 = vsel %vm825, %v867, -inf
        %1011 = vmax.xlane.f32.xlu0 %v1010
        %v1012 = vpop.xlane.xlu0 %1011
        %v1013 = vsel %vm825, %v913, -inf
        %1014 = vmax.xlane.f32.xlu0 %v1013
        %v1015 = vpop.xlane.xlu0 %1014
        %v1016 = vsel %vm825, %v959, -inf
        %1017 = vmax.xlane.f32.xlu0 %v1016
        %v1018 = vpop.xlane.xlu0 %1017
        %v1019 = vsel %vm825, %v1005, -inf
        %1020 = vmax.xlane.f32.xlu0 %v1019
        %v1021 = vpop.xlane.xlu0 %1020
        %v1022 = vsub.f32 %v867, %v1012
        %v1023 = vsub.f32 %v913, %v1015
        %v1024 = vsub.f32 %v959, %v1018
        %v1025 = vsub.f32 %v1005, %v1021
        %v1026 = vmul.f32 %v1022, 1.442695
        %v1027 = vpow.pop %v1026
        %v1028 = vmul.f32 %v1023, 1.442695
        %v1029 = vpow.pop %v1028
        %v1030 = vmul.f32 %v1024, 1.442695
        %v1031 = vpow.pop %v1030
        %v1032 = vmul.f32 %v1025, 1.442695
        %v1033 = vpow.pop %v1032
        %v1034 = vsel %vm825, %v1027, 0.0
        %1035 = vadd.xlane.f32.xlu0 %v1034
        %v1036 = vpop.xlane.xlu0 %1035
        %v1037 = vsel %vm825, %v1029, 0.0
        %1038 = vadd.xlane.f32.xlu0 %v1037
        %v1039 = vpop.xlane.xlu0 %1038
        %v1040 = vsel %vm825, %v1031, 0.0
        %1041 = vadd.xlane.f32.xlu0 %v1040
        %v1042 = vpop.xlane.xlu0 %1041
        %v1043 = vsel %vm825, %v1033, 0.0
        %1044 = vadd.xlane.f32.xlu0 %v1043
        %v1045 = vpop.xlane.xlu0 %1044
        %v1046 = vrcp.pop %v1036
        %v1047 = vrcp.pop %v1039
        %v1048 = vrcp.pop %v1042
        %v1049 = vrcp.pop %v1045
        %v1050 = vmul.f32 %v1027, %v1046
        %v1051 = vmul.f32 %v1029, %v1047
        %v1052 = vmul.f32 %v1031, %v1048
        %v1053 = vmul.f32 %v1033, %v1049
        %v1054 = vpack.c.bf16 %v1050, %v1050
        %v1055 = vpack.c.bf16 %v1051, %v1051
        %v1056 = vpack.c.bf16 %v1052, %v1052
        %v1057 = vpack.c.bf16 %v1053, %v1053
        %v1059 = vsel %vm825, %v1054, 0
        %vm1061 = vcmask 1043456
        %v1063 = vsel %vm1061, %v813, 0
        %1065 = vmatprep.subr.bf16.mxu0 0
        %1066 = vmatpush1.bf16.msra.mxu0 0
        %1067 = vmatprep.subr.bf16.mxu0 0
        %1068 = vmatpush1.bf16.msra.mxu0 0
        %1069 = vmatprep.subr.bf16.mxu0 0
        %1070 = vmatpush1.bf16.msra.mxu0 0
        %1071 = vmatprep.subr.bf16.mxu0 0
        %1072 = vmatpush1.bf16.msra.mxu0 0
        %1073 = vmatprep.subr.bf16.mxu0 0
        %1074 = vmatpush1.bf16.msra.mxu0 0
        %1075 = vmatprep.subr.bf16.mxu0 0
        %1076 = vmatpush1.bf16.msra.mxu0 0
        %1077 = vmatprep.subr.bf16.mxu0 0
        %1078 = vmatpush1.bf16.msra.mxu0 0
        %1079 = vmatprep.subr.bf16.mxu0 0
        %1080 = vmatpush1.bf16.msra.mxu0 %v1063
        %1081 = vmatprep.subr.bf16.mxu0 0
        %1082 = vmatpush2.bf16.msra.mxu0 0
        %1083 = vmatprep.subr.bf16.mxu0 0
        %1084 = vmatpush2.bf16.msra.mxu0 0
        %1085 = vmatprep.subr.bf16.mxu0 0
        %1086 = vmatpush2.bf16.msra.mxu0 0
        %1087 = vmatprep.subr.bf16.mxu0 0
        %1088 = vmatpush2.bf16.msra.mxu0 0
        %1089 = vmatprep.subr.bf16.mxu0 0
        %1090 = vmatpush2.bf16.msra.mxu0 0
        %1091 = vmatprep.subr.bf16.mxu0 0
        %1092 = vmatpush2.bf16.msra.mxu0 0
        %1093 = vmatprep.subr.bf16.mxu0 0
        %1094 = vmatpush2.bf16.msra.mxu0 0
        %1095 = vmatprep.subr.bf16.mxu0 0
        %1096 = vmatpush2.bf16.msra.mxu0 0
        %1097 = vmatprep.mubr.bf16.mxu0 0
        %1098 = vmatmul.mubr.bf16.gmra.mxu0 %v1059
        %v1099 = vpop.f32.mrf.mxu0
        %v1100 = vadd.f32 0.0, %v1099
        %v1101 = vpop.f32.mrf.mxu0
        %v1102 = vpop.f32.mrf.mxu0
        %v1103 = vpop.f32.mrf.mxu0
        %1104 = vdwg.mxu0
        %v1106 = vsel %vm825, %v1055, 0
        %v1109 = vsel %vm1061, %v814, 0
        %1111 = vmatprep.subr.bf16.mxu0 0
        %1112 = vmatpush1.bf16.msra.mxu0 0
        %1113 = vmatprep.subr.bf16.mxu0 0
        %1114 = vmatpush1.bf16.msra.mxu0 0
        %1115 = vmatprep.subr.bf16.mxu0 0
        %1116 = vmatpush1.bf16.msra.mxu0 0
        %1117 = vmatprep.subr.bf16.mxu0 0
        %1118 = vmatpush1.bf16.msra.mxu0 0
        %1119 = vmatprep.subr.bf16.mxu0 0
        %1120 = vmatpush1.bf16.msra.mxu0 0
        %1121 = vmatprep.subr.bf16.mxu0 0
        %1122 = vmatpush1.bf16.msra.mxu0 0
        %1123 = vmatprep.subr.bf16.mxu0 0
        %1124 = vmatpush1.bf16.msra.mxu0 0
        %1125 = vmatprep.subr.bf16.mxu0 0
        %1126 = vmatpush1.bf16.msra.mxu0 %v1109
        %1127 = vmatprep.subr.bf16.mxu0 0
        %1128 = vmatpush2.bf16.msra.mxu0 0
        %1129 = vmatprep.subr.bf16.mxu0 0
        %1130 = vmatpush2.bf16.msra.mxu0 0
        %1131 = vmatprep.subr.bf16.mxu0 0
        %1132 = vmatpush2.bf16.msra.mxu0 0
        %1133 = vmatprep.subr.bf16.mxu0 0
        %1134 = vmatpush2.bf16.msra.mxu0 0
        %1135 = vmatprep.subr.bf16.mxu0 0
        %1136 = vmatpush2.bf16.msra.mxu0 0
        %1137 = vmatprep.subr.bf16.mxu0 0
        %1138 = vmatpush2.bf16.msra.mxu0 0
        %1139 = vmatprep.subr.bf16.mxu0 0
        %1140 = vmatpush2.bf16.msra.mxu0 0
        %1141 = vmatprep.subr.bf16.mxu0 0
        %1142 = vmatpush2.bf16.msra.mxu0 0
        %1143 = vmatprep.mubr.bf16.mxu0 0
        %1144 = vmatmul.mubr.bf16.gmra.mxu0 %v1106
        %v1145 = vpop.f32.mrf.mxu0
        %v1146 = vadd.f32 0.0, %v1145
        %v1147 = vpop.f32.mrf.mxu0
        %v1148 = vpop.f32.mrf.mxu0
        %v1149 = vpop.f32.mrf.mxu0
        %1150 = vdwg.mxu0
        %v1152 = vsel %vm825, %v1056, 0
        %v1155 = vsel %vm1061, %v815, 0
        %1157 = vmatprep.subr.bf16.mxu0 0
        %1158 = vmatpush1.bf16.msra.mxu0 0
        %1159 = vmatprep.subr.bf16.mxu0 0
        %1160 = vmatpush1.bf16.msra.mxu0 0
        %1161 = vmatprep.subr.bf16.mxu0 0
        %1162 = vmatpush1.bf16.msra.mxu0 0
        %1163 = vmatprep.subr.bf16.mxu0 0
        %1164 = vmatpush1.bf16.msra.mxu0 0
        %1165 = vmatprep.subr.bf16.mxu0 0
        %1166 = vmatpush1.bf16.msra.mxu0 0
        %1167 = vmatprep.subr.bf16.mxu0 0
        %1168 = vmatpush1.bf16.msra.mxu0 0
        %1169 = vmatprep.subr.bf16.mxu0 0
        %1170 = vmatpush1.bf16.msra.mxu0 0
        %1171 = vmatprep.subr.bf16.mxu0 0
        %1172 = vmatpush1.bf16.msra.mxu0 %v1155
        %1173 = vmatprep.subr.bf16.mxu0 0
        %1174 = vmatpush2.bf16.msra.mxu0 0
        %1175 = vmatprep.subr.bf16.mxu0 0
        %1176 = vmatpush2.bf16.msra.mxu0 0
        %1177 = vmatprep.subr.bf16.mxu0 0
        %1178 = vmatpush2.bf16.msra.mxu0 0
        %1179 = vmatprep.subr.bf16.mxu0 0
        %1180 = vmatpush2.bf16.msra.mxu0 0
        %1181 = vmatprep.subr.bf16.mxu0 0
        %1182 = vmatpush2.bf16.msra.mxu0 0
        %1183 = vmatprep.subr.bf16.mxu0 0
        %1184 = vmatpush2.bf16.msra.mxu0 0
        %1185 = vmatprep.subr.bf16.mxu0 0
        %1186 = vmatpush2.bf16.msra.mxu0 0
        %1187 = vmatprep.subr.bf16.mxu0 0
        %1188 = vmatpush2.bf16.msra.mxu0 0
        %1189 = vmatprep.mubr.bf16.mxu0 0
        %1190 = vmatmul.mubr.bf16.gmra.mxu0 %v1152
        %v1191 = vpop.f32.mrf.mxu0
        %v1192 = vadd.f32 0.0, %v1191
        %v1193 = vpop.f32.mrf.mxu0
        %v1194 = vpop.f32.mrf.mxu0
        %v1195 = vpop.f32.mrf.mxu0
        %1196 = vdwg.mxu0
        %v1198 = vsel %vm825, %v1057, 0
        %v1201 = vsel %vm1061, %v816, 0
        %1203 = vmatprep.subr.bf16.mxu0 0
        %1204 = vmatpush1.bf16.msra.mxu0 0
        %1205 = vmatprep.subr.bf16.mxu0 0
        %1206 = vmatpush1.bf16.msra.mxu0 0
        %1207 = vmatprep.subr.bf16.mxu0 0
        %1208 = vmatpush1.bf16.msra.mxu0 0
        %1209 = vmatprep.subr.bf16.mxu0 0
        %1210 = vmatpush1.bf16.msra.mxu0 0
        %1211 = vmatprep.subr.bf16.mxu0 0
        %1212 = vmatpush1.bf16.msra.mxu0 0
        %1213 = vmatprep.subr.bf16.mxu0 0
        %1214 = vmatpush1.bf16.msra.mxu0 0
        %1215 = vmatprep.subr.bf16.mxu0 0
        %1216 = vmatpush1.bf16.msra.mxu0 0
        %1217 = vmatprep.subr.bf16.mxu0 0
        %1218 = vmatpush1.bf16.msra.mxu0 %v1201
        %1219 = vmatprep.subr.bf16.mxu0 0
        %1220 = vmatpush2.bf16.msra.mxu0 0
        %1221 = vmatprep.subr.bf16.mxu0 0
        %1222 = vmatpush2.bf16.msra.mxu0 0
        %1223 = vmatprep.subr.bf16.mxu0 0
        %1224 = vmatpush2.bf16.msra.mxu0 0
        %1225 = vmatprep.subr.bf16.mxu0 0
        %1226 = vmatpush2.bf16.msra.mxu0 0
        %1227 = vmatprep.subr.bf16.mxu0 0
        %1228 = vmatpush2.bf16.msra.mxu0 0
        %1229 = vmatprep.subr.bf16.mxu0 0
        %1230 = vmatpush2.bf16.msra.mxu0 0
        %1231 = vmatprep.subr.bf16.mxu0 0
        %1232 = vmatpush2.bf16.msra.mxu0 0
        %1233 = vmatprep.subr.bf16.mxu0 0
        %1234 = vmatpush2.bf16.msra.mxu0 0
        %1235 = vmatprep.mubr.bf16.mxu0 0
        %1236 = vmatmul.mubr.bf16.gmra.mxu0 %v1198
        %v1237 = vpop.f32.mrf.mxu0
        %v1238 = vadd.f32 0.0, %v1237
        %v1239 = vpop.f32.mrf.mxu0
        %v1240 = vpop.f32.mrf.mxu0
        %v1241 = vpop.f32.mrf.mxu0
        %1242 = vdwg.mxu0
        %1244 = vrot.lane.b32.xlu0 %v1146, 8
        %v1245 = vpop.permute.xlu0 %1244
        %1248 = vrot.lane.b32.xlu0 %v1192, 16
        %v1249 = vpop.permute.xlu0 %1248
        %1252 = vrot.lane.b32.xlu0 %v1238, 24
        %v1253 = vpop.permute.xlu0 %1252
        %v1255 = vsel %vm825, %v1100, %v1245
        %vm1256 = vcmask 130048
        %v1257 = vsel %vm1256, %v1255, %v1249
        %vm1258 = vcmask 195584
        %v1259 = vsel %vm1258, %v1257, %v1253
        %v1260 = vpack.c.bf16 %v1259, %v1259
        %v1261 = vld [vmem:[#allocation11] sm:$0xf]
        %v1262 = vld [vmem:[#allocation11 + $0x4] sm:$0xf]
        %v1263 = vld [vmem:[#allocation11 + $0x8] sm:$0xf]
        %v1264 = vld [vmem:[#allocation11 + $0xc] sm:$0xf]
        %v1265 = vlaneseq
        %v1266 = vshrl.u32 %v1265, 7
        %v1267 = vsub.s32 1, %v1266
        %v1268 = vrot.slane %v727, %v1267
        %v1273 = vunpack.c.l.b16 %v1261
        %v1274 = vunpack.c.l.b16 %v1262
        %v1275 = vunpack.c.l.b16 %v1263
        %v1276 = vunpack.c.l.b16 %v1264
        %v1277 = vpack.c.b16 %v1274, %v1273
        %v1278 = vpack.c.b16 %v1276, %v1275
        %v1282 = vsel %vm750, %v1260, 0
        %1284 = vmatprep.subr.bf16.mxu0 0
        %1285 = vmatpush1.bf16.msra.mxu0 0
        %1286 = vmatprep.subr.bf16.mxu0 0
        %1287 = vmatpush1.bf16.msra.mxu0 0
        %1288 = vmatprep.subr.bf16.mxu0 0
        %1289 = vmatpush1.bf16.msra.mxu0 0
        %1290 = vmatprep.subr.bf16.mxu0 0
        %1291 = vmatpush1.bf16.msra.mxu0 0
        %1292 = vmatprep.subr.bf16.mxu0 0
        %1293 = vmatpush1.bf16.msra.mxu0 0
        %1294 = vmatprep.subr.bf16.mxu0 0
        %1295 = vmatpush1.bf16.msra.mxu0 0
        %1296 = vmatprep.subr.bf16.mxu0 0
        %1297 = vmatpush1.bf16.msra.mxu0 %v1278
        %1298 = vmatprep.subr.bf16.mxu0 0
        %1299 = vmatpush1.bf16.msra.mxu0 %v1277
        %1300 = vmatprep.subr.bf16.mxu0 0
        %1301 = vmatpush2.bf16.msra.mxu0 0
        %1302 = vmatprep.subr.bf16.mxu0 0
        %1303 = vmatpush2.bf16.msra.mxu0 0
        %1304 = vmatprep.subr.bf16.mxu0 0
        %1305 = vmatpush2.bf16.msra.mxu0 0
        %1306 = vmatprep.subr.bf16.mxu0 0
        %1307 = vmatpush2.bf16.msra.mxu0 0
        %1308 = vmatprep.subr.bf16.mxu0 0
        %1309 = vmatpush2.bf16.msra.mxu0 0
        %1310 = vmatprep.subr.bf16.mxu0 0
        %1311 = vmatpush2.bf16.msra.mxu0 0
        %1312 = vmatprep.subr.bf16.mxu0 0
        %1313 = vmatpush2.bf16.msra.mxu0 0
        %1314 = vmatprep.subr.bf16.mxu0 0
        %1315 = vmatpush2.bf16.msra.mxu0 0
        %1316 = vmatprep.mubr.bf16.mxu0 0
        %1317 = vmatmul.mubr.bf16.gmra.mxu0 %v1282
        %v1318 = vpop.f32.mrf.mxu0
        %v1319 = vadd.f32 %v1268, %v1318
        %v1320 = vpop.f32.mrf.mxu0
        %v1321 = vpop.f32.mrf.mxu0
        %v1322 = vpop.f32.mrf.mxu0
        %1323 = vdwg.mxu0
        %v1324 = vadd.f32 %v728, %v1319
        %v1325 = vsel %vm750, %v1324, 0.0
        %1326 = vadd.xlane.f32.xlu0 %v1325
        %v1327 = vpop.xlane.xlu0 %1326
        %v1328 = vrcp.pop 32.0
        %v1329 = vmul.f32 %v1327, %v1328
        %v1330 = vsub.f32 %v1324, %v1329
        %v1331 = vmul.f32 %v1330, %v1330
        %v1332 = vsel %vm750, %v1331, 0.0
        %1333 = vadd.xlane.f32.xlu0 %v1332
        %v1334 = vpop.xlane.xlu0 %1333
        %v1335 = vmul.f32 %v1334, %v1328
        %v1336 = vadd.f32 %v1335, 1e-05
        %v1337 = vrsqrt.pop %v1336
        %v1338 = vmul.f32 %v1330, %v1337
        %v1339 = vlaneseq
        %v1340 = vshrl.u32 %v1339, 7
        %v1341 = vsub.s32 3, %v1340
        %v1342 = vrot.slane %v727, %v1341
        %v1343 = vmul.f32 %v1338, %v1342
        %v1344 = vlaneseq
        %v1345 = vshrl.u32 %v1344, 7
        %v1346 = vsub.s32 4, %v1345
        %v1347 = vrot.slane %v727, %v1346
        %v1348 = vadd.f32 %v1343, %v1347
        %v1349 = vpack.c.bf16 %v1348, %v1348
        %v1350 = vld [vmem:[#allocation12] sm:$0xf]
        %v1351 = vld [vmem:[#allocation12 + $0x4] sm:$0xf]
        %v1352 = vld [vmem:[#allocation12 + $0x8] sm:$0xf]
        %v1353 = vld [vmem:[#allocation12 + $0xc] sm:$0xf]
        %v1354 = vld [vmem:[#allocation14] sm:$0x1]
        %v1356 = vlaneseq
        %v1357 = vshrl.u32 %v1356, 7
        %v1358 = vsub.s32 0, %v1357
        %v1359 = vrot.slane %v1354, %v1358
        %v1365 = vunpack.c.l.b16 %v1350
        %v1366 = vunpack.c.l.b16 %v1351
        %v1367 = vunpack.c.l.b16 %v1352
        %v1368 = vunpack.c.l.b16 %v1353
        %v1369 = vpack.c.b16 %v1366, %v1365
        %v1370 = vpack.c.b16 %v1368, %v1367
        %v1374 = vsel %vm750, %v1349, 0
        %1376 = vmatprep.subr.bf16.mxu0 0
        %1377 = vmatpush1.bf16.msra.mxu0 0
        %1378 = vmatprep.subr.bf16.mxu0 0
        %1379 = vmatpush1.bf16.msra.mxu0 0
        %1380 = vmatprep.subr.bf16.mxu0 0
        %1381 = vmatpush1.bf16.msra.mxu0 0
        %1382 = vmatprep.subr.bf16.mxu0 0
        %1383 = vmatpush1.bf16.msra.mxu0 0
        %1384 = vmatprep.subr.bf16.mxu0 0
        %1385 = vmatpush1.bf16.msra.mxu0 0
        %1386 = vmatprep.subr.bf16.mxu0 0
        %1387 = vmatpush1.bf16.msra.mxu0 0
        %1388 = vmatprep.subr.bf16.mxu0 0
        %1389 = vmatpush1.bf16.msra.mxu0 %v1370
        %1390 = vmatprep.subr.bf16.mxu0 0
        %1391 = vmatpush1.bf16.msra.mxu0 %v1369
        %1392 = vmatprep.subr.bf16.mxu0 0
        %1393 = vmatpush2.bf16.msra.mxu0 0
        %1394 = vmatprep.subr.bf16.mxu0 0
        %1395 = vmatpush2.bf16.msra.mxu0 0
        %1396 = vmatprep.subr.bf16.mxu0 0
        %1397 = vmatpush2.bf16.msra.mxu0 0
        %1398 = vmatprep.subr.bf16.mxu0 0
        %1399 = vmatpush2.bf16.msra.mxu0 0
        %1400 = vmatprep.subr.bf16.mxu0 0
        %1401 = vmatpush2.bf16.msra.mxu0 0
        %1402 = vmatprep.subr.bf16.mxu0 0
        %1403 = vmatpush2.bf16.msra.mxu0 0
        %1404 = vmatprep.subr.bf16.mxu0 0
        %1405 = vmatpush2.bf16.msra.mxu0 0
        %1406 = vmatprep.subr.bf16.mxu0 0
        %1407 = vmatpush2.bf16.msra.mxu0 0
        %1408 = vmatprep.mubr.bf16.mxu0 0
        %1409 = vmatmul.mubr.bf16.gmra.mxu0 %v1374
        %v1410 = vpop.f32.mrf.mxu0
        %v1411 = vadd.f32 %v1359, %v1410
        %v1412 = vpop.f32.mrf.mxu0
        %v1413 = vpop.f32.mrf.mxu0
        %v1414 = vpop.f32.mrf.mxu0
        %1415 = vdwg.mxu0
        %v1416 = vmax.f32 %v1411, 0.0
        %v1417 = vpack.c.bf16 %v1416, %v1416
        %v1418 = vld [vmem:[%s9] sm:$0xf]
        %v1419 = vld [vmem:[%s9 + $0x4] sm:$0xf]
        %v1420 = vld [vmem:[%s9 + $0x8] sm:$0xf]
        %v1421 = vld [vmem:[%s9 + $0xc] sm:$0xf]
        %v1422 = vld [vmem:[%s9 + $0x10] sm:$0xf]
        %v1423 = vld [vmem:[%s9 + $0x14] sm:$0xf]
        %v1424 = vld [vmem:[%s9 + $0x18] sm:$0xf]
        %v1425 = vld [vmem:[%s9 + $0x1c] sm:$0xf]
        %v1426 = vlaneseq
        %v1427 = vshrl.u32 %v1426, 7
        %v1428 = vsub.s32 2, %v1427
        %v1429 = vrot.slane %v727, %v1428
        %v1438 = vunpack.c.l.b16 %v1418
        %v1439 = vunpack.c.l.b16 %v1419
        %v1440 = vunpack.c.l.b16 %v1420
        %v1441 = vunpack.c.l.b16 %v1421
        %v1442 = vunpack.c.l.b16 %v1422
        %v1443 = vunpack.c.l.b16 %v1423
        %v1444 = vunpack.c.l.b16 %v1424
        %v1445 = vunpack.c.l.b16 %v1425
        %v1446 = vpack.c.b16 %v1439, %v1438
        %v1447 = vpack.c.b16 %v1441, %v1440
        %v1448 = vpack.c.b16 %v1443, %v1442
        %v1449 = vpack.c.b16 %v1445, %v1444
        %vm1454 = vcmask 523264
        %v1456 = vsel %vm1454, %v1417, 0
        %1458 = vmatprep.subr.bf16.mxu0 0
        %1459 = vmatpush1.bf16.msra.mxu0 0
        %1460 = vmatprep.subr.bf16.mxu0 0
        %1461 = vmatpush1.bf16.msra.mxu0 0
        %1462 = vmatprep.subr.bf16.mxu0 0
        %1463 = vmatpush1.bf16.msra.mxu0 0
        %1464 = vmatprep.subr.bf16.mxu0 0
        %1465 = vmatpush1.bf16.msra.mxu0 0
        %1466 = vmatprep.subr.bf16.mxu0 0
        %1467 = vmatpush1.bf16.msra.mxu0 %v1449
        %1468 = vmatprep.subr.bf16.mxu0 0
        %1469 = vmatpush1.bf16.msra.mxu0 %v1448
        %1470 = vmatprep.subr.bf16.mxu0 0
        %1471 = vmatpush1.bf16.msra.mxu0 %v1447
        %1472 = vmatprep.subr.bf16.mxu0 0
        %1473 = vmatpush1.bf16.msra.mxu0 %v1446
        %1474 = vmatprep.subr.bf16.mxu0 0
        %1475 = vmatpush2.bf16.msra.mxu0 0
        %1476 = vmatprep.subr.bf16.mxu0 0
        %1477 = vmatpush2.bf16.msra.mxu0 0
        %1478 = vmatprep.subr.bf16.mxu0 0
        %1479 = vmatpush2.bf16.msra.mxu0 0
        %1480 = vmatprep.subr.bf16.mxu0 0
        %1481 = vmatpush2.bf16.msra.mxu0 0
        %1482 = vmatprep.subr.bf16.mxu0 0
        %1483 = vmatpush2.bf16.msra.mxu0 0
        %1484 = vmatprep.subr.bf16.mxu0 0
        %1485 = vmatpush2.bf16.msra.mxu0 0
        %1486 = vmatprep.subr.bf16.mxu0 0
        %1487 = vmatpush2.bf16.msra.mxu0 0
        %1488 = vmatprep.subr.bf16.mxu0 0
        %1489 = vmatpush2.bf16.msra.mxu0 0
        %1490 = vmatprep.mubr.bf16.mxu0 0
        %1491 = vmatmul.mubr.bf16.gmra.mxu0 %v1456
        %v1492 = vpop.f32.mrf.mxu0
        %v1493 = vadd.f32 %v1429, %v1492
        %v1494 = vpop.f32.mrf.mxu0
        %v1495 = vpop.f32.mrf.mxu0
        %v1496 = vpop.f32.mrf.mxu0
        %1497 = vdwg.mxu0
        %v1498 = vadd.f32 %v1348, %v1493
        %v1499 = vsel %vm750, %v1498, 0.0
        %1500 = vadd.xlane.f32.xlu0 %v1499
        %v1501 = vpop.xlane.xlu0 %1500
        %v1502 = vmul.f32 %v1501, %v1328
        %v1503 = vsub.f32 %v1498, %v1502
        %v1504 = vmul.f32 %v1503, %v1503
        %v1505 = vsel %vm750, %v1504, 0.0
        %1506 = vadd.xlane.f32.xlu0 %v1505
        %v1507 = vpop.xlane.xlu0 %1506
        %v1508 = vmul.f32 %v1507, %v1328
        %v1509 = vadd.f32 %v1508, 1e-05
        %v1510 = vrsqrt.pop %v1509
        %v1511 = vmul.f32 %v1503, %v1510
        %v1512 = vlaneseq
        %v1513 = vshrl.u32 %v1512, 7
        %v1514 = vsub.s32 5, %v1513
        %v1515 = vrot.slane %v727, %v1514
        %v1516 = vmul.f32 %v1511, %v1515
        %v1517 = vlaneseq
        %v1518 = vshrl.u32 %v1517, 7
        %v1519 = vsub.s32 6, %v1518
        %v1520 = vrot.slane %v727, %v1519
        %v1521 = vadd.f32 %v1516, %v1520
        %1522 = vst.msk [vmem:[%s589] sm:$0xff] %vm750, %v1521
        %v1523 = vpack.c.bf16 %v1521, %v1521
        %vm1524 = vcmask 257024
        %1525 = vst.msk [vmem:[%s596] sm:$0xf] %vm1524, %v1523
        %s1526 = sand.u32 %s309, 1
        %s1527 = scalar_lea.sflag [#allocation5], %s1526
        %s1528 = sand.u32 %s309, 1
        %s1529 = smul.addr %s1528, 8
        %s1530 = scalar_lea.vmem [#allocation17], %s1529
        %s1531 = sand.u32 %s337, 1
        %s1532 = scalar_lea.sflag [#allocation19], %s1531
        %s1533 = sand.u32 %s337, 1
        %s1534 = smul.addr %s1533, 4
        %s1535 = scalar_lea.vmem [#allocation18], %s1534
        // Predicated region
        $region101: #{tpu_custom_call.1} parent=63 // pred_check
          %p1536 = pneg %p319
        $region102: #{tpu_custom_call.1} parent=63 // pred_check_branch
          %1538 = sbr.rel (%p1536) target = $region104
        $region103: #{tpu_custom_call.1} parent=63 // pred_region
          %s1540 = ssub.s32 128, 128
          %1541 = vsyncadd %s1527, %s1540
          %s1542 = sadd.s32 %s42, %s41
          %s1543 = smul.addr %s1542, 128
          %s1544 = scalar_lea.hbm %s11, %s1543
          %s1546 = sshll.u32 %s1530, 4
          %s1547 = int_to_ptr.vmem [resolvable:$true] %s1546
          %1549 = dma.vmem_to_hbm [thread:$0]  %s1547, 128, %s1544, %s1527
        $region104: #{tpu_custom_call.1} parent=63 // pred_fallthru
          _
        // Predicated region
        $region105: #{tpu_custom_call.1} parent=63 // pred_check
          %p1550 = pneg %p347
        $region106: #{tpu_custom_call.1} parent=63 // pred_check_branch
          %1552 = sbr.rel (%p1550) target = $region108
        $region107: #{tpu_custom_call.1} parent=63 // pred_region
          %s1554 = ssub.s32 64, 64
          %1555 = vsyncadd %s1532, %s1554
          %s1556 = sadd.s32 %s42, %s41
          %s1557 = smul.addr %s1556, 64
          %s1558 = scalar_lea.hbm %s12, %s1557
          %s1560 = sshll.u32 %s1535, 4
          %s1561 = int_to_ptr.vmem [resolvable:$true] %s1560
          %1563 = dma.vmem_to_hbm [thread:$0]  %s1561, 64, %s1558, %s1532
        $region108: #{tpu_custom_call.1} parent=63 // pred_fallthru
          _
      $region64: #{tpu_custom_call.1} parent=5 // pred_fallthru
        _
      %p1564 = scmp.le.s32.totalorder 2, %s32
      // Predicated region
      $region109: #{tpu_custom_call.1} parent=5 // pred_check
        %p1565 = pneg %p1564
      $region110: #{tpu_custom_call.1} parent=5 // pred_check_branch
        %1567 = sbr.rel (%p1565) target = $region112
      $region111: #{tpu_custom_call.1} parent=5 // pred_region
        %s1568 = ssub.s32 %s32, 2
        // Predicated region
        $region113: #{tpu_custom_call.1} parent=111 // pred_check
          %p1569 = pneg %p325
        $region114: #{tpu_custom_call.1} parent=111 // pred_check_branch
          %1571 = sbr.rel (%p1569) target = $region116
        $region115: #{tpu_custom_call.1} parent=111 // pred_region
          %s1572 = sand.u32 %s310, 1
          %s1573 = scalar_lea.sflag [#allocation5], %s1572
          %s1574 = sand.u32 %s310, 1
          %s1575 = smul.addr %s1574, 8
          %s1576 = scalar_lea.vmem [#allocation17], %s1575
          %1577 = dma.done %s1573, 128
        $region116: #{tpu_custom_call.1} parent=111 // pred_fallthru
          _
        // Predicated region
        $region117: #{tpu_custom_call.1} parent=111 // pred_check
          %p1578 = pneg %p353
        $region118: #{tpu_custom_call.1} parent=111 // pred_check_branch
          %1580 = sbr.rel (%p1578) target = $region120
        $region119: #{tpu_custom_call.1} parent=111 // pred_region
          %s1581 = sand.u32 %s338, 1
          %s1582 = scalar_lea.sflag [#allocation19], %s1581
          %s1583 = sand.u32 %s338, 1
          %s1584 = smul.addr %s1583, 4
          %s1585 = scalar_lea.vmem [#allocation18], %s1584
          %1586 = dma.done %s1582, 64
        $region120: #{tpu_custom_call.1} parent=111 // pred_fallthru
          _
      $region112: #{tpu_custom_call.1} parent=5 // pred_fallthru
        _
    $region6: #{tpu_custom_call.1} parent=1 // loop_footer
      %s36 = sadd.s32 1, %s32
    $region7: #{tpu_custom_call.1} parent=1 // loop_footer_branch
      %31 = sbr.rel target = $region3
    $region8: #{tpu_custom_call.1} parent=1 // loop_exit
      _
    %1587 = vsyncpa [#allocation4], 1
    %s1588 = scalar_lea.sflag [#allocation4], 1
    %1589 = vsyncpa %s1588, 1
    %1590 = vsyncpa [#allocation7], 1
    %1591 = vsyncpa [#allocation10], 1
    %1592 = vsyncpa [#allocation13], 1
    %1593 = vsyncpa [#allocation16], 1
    %1594 = vsyncpa [#allocation5], 1
    %s1595 = scalar_lea.sflag [#allocation5], 1
    %1596 = vsyncpa %s1595, 1
    %1597 = vsyncpa [#allocation19], 1
    %s1598 = scalar_lea.sflag [#allocation19], 1
    %1599 = vsyncpa %s1598, 1

</llo_original>
